<compile_context>
chip_gen: v7x
topology: tpu7x:2x2x1
jax: 0.10.0
libtpu: 0.0.40
codegen_flags: <defaults>
</compile_context>

<pallas_src>
import functools

import jax
import jax.numpy as jnp
from jax.experimental import pallas as pl
from jax.experimental.pallas import tpu as pltpu


def _cdiv(a, b):
    return -(-a // b)


def _elu(v):
    # ELU(alpha=1); clamp the exp argument so the unselected branch is finite.
    return jnp.where(v > 0, v, jnp.exp(jnp.minimum(v, 0.0)) - 1.0)


def _vmem_capacity_bytes():
    try:
        return int(pltpu.get_tpu_info().vmem_capacity_bytes)
    except Exception:
        return 64 * 1024 * 1024            # conservative (v7x-sized) fallback


def _choose_tiling(C, Cs, Hr, Wr, N, in_bytes, out_bytes, w_bytes, vmem_cap):
    """Pick (cout_tile, row_groups G) so double-buffered blocks fit VMEM."""
    budget = max(4 * 1024 * 1024, int(vmem_cap * 0.30))

    def need(ct, g):
        blk = (ct * 8 * (8 * Cs) * w_bytes        # block-diagonal weights
               + ct * 8 * 4                       # per-row bias
               + 2 * 8 * Cs * 4                   # preact scale / shift
               + 8 * g * Cs * Wr * in_bytes       # shuffled-input block
               + ct * 8 * g * Wr * out_bytes)     # output block
        return 2 * blk                            # double buffering

    g = max(1, min(Hr // 8, 32))                  # 8*g output rows per step
    ct = C
    while g > 1 and need(ct, g) > budget:
        g = max(1, g // 2)
    while ct > 8 and need(ct, g) > budget:
        ct = max(8, ct // 2)
    # v7x: make sure there are >= 2 grid steps so both TensorCores get work.
    if N * _cdiv(C, ct) * _cdiv(Hr, 8 * g) < 2 and Hr >= 16:
        g = max(1, (Hr // 8) // 2)
    return ct, g


def _ps_conv_bn_elu_kernel(l_ref, b_ref, ps_ref, pt_ref, x_ref, o_ref, *,
                           cs, groups, preact, post_elu, mxu_bf16, hr,
                           mask_rows):
    # l_ref : (cout_t*8, 8*cs)  block-diagonal (I_8 (x) W_eff)
    # b_ref : (cout_t*8, 1)     bias per (channel, row-in-group)
    # ps/pt : (8*cs, 1)         preact BN scale / shift per input row
    # x_ref : (8*groups*cs, Wr) shuffled input rows (row-major, cs-minor)
    # o_ref : (cout_t, 8*groups, Wr)  final NCHW output block
    cout_t = o_ref.shape[0]
    wr = o_ref.shape[2]
    rows = 8 * cs
    lhs = l_ref[...]
    bias = b_ref[...]
    for g in range(groups):
        xg = x_ref[g * rows:(g + 1) * rows, :].astype(jnp.float32)
        if mask_rows:
            # Hr is not a multiple of 8: zero out-of-range rows so stale VMEM
            # garbage (possibly Inf/NaN) cannot contaminate valid rows through
            # the matmul's zero weights (0 * NaN = NaN).
            ridx = jax.lax.broadcasted_iota(jnp.int32, (rows, 1), 0) // cs
            row0 = pl.program_id(2) * (8 * groups) + g * 8
            xg = jnp.where(row0 + ridx < hr, xg, 0.0)
        if preact:
            xg = _elu(xg * ps_ref[...] + pt_ref[...])
        rhs = xg.astype(jnp.bfloat16) if mxu_bf16 else xg
        y = jnp.dot(lhs, rhs, preferred_element_type=jnp.float32)
        y = y + bias
        if post_elu:
            y = _elu(y)
        # (cout_t*8, Wr) -> (cout_t, 8, Wr): splits sublanes in groups of 8,
        # layout preserving; the store is a tile-aligned dense slab.
        o_ref[:, g * 8:(g + 1) * 8, :] = (
            y.reshape(cout_t, 8, wr).astype(o_ref.dtype))


def pixel_shuffle_upsample_pallas(x, conv_w, conv_b, gamma, beta, mean, var,
                                  pooling_factor, preact=False, eps=1e-5,
                                  mxu_bf16=False):
    r = int(pooling_factor)
    N, C, H, W = x.shape
    assert C % (r * r) == 0, "in_dim must be divisible by pooling_factor**2"
    Cs = C // (r * r)
    Hr, Wr = H * r, W * r
    assert Hr >= 8, "H*pooling_factor must be >= 8"  # TODO(synk): tiny-Hr path
    f32 = jnp.float32

    # ---- pixel-shuffle the SMALL input into a dense stacked-row layout:
    #      xst[n, i*Cs + cs, j] == PixelShuffle(x)[n, cs, i, j]
    x6 = x.reshape(N, Cs, r, r, H, W)
    xst = jnp.transpose(x6, (0, 4, 2, 1, 5, 3)).reshape(N, Hr * Cs, Wr)

    inv_std = 1.0 / jnp.sqrt(var.astype(f32) + eps)
    g_ = gamma.astype(f32)
    bt = beta.astype(f32)
    mu = mean.astype(f32)
    wconv = conv_w.astype(f32).reshape(C, Cs)
    bconv = conv_b.astype(f32)

    if preact:
        # forward: conv(ELU(BN(shuffled)));  BN over Cs input channels
        w_eff = wconv
        b_eff = bconv
        pre_scale = g_ * inv_std
        pre_shift = bt - mu * g_ * inv_std
        post_elu = False
    else:
        # forward: ELU(BN(conv(shuffled)));  fold BN (C channels) into conv
        s = g_ * inv_std
        w_eff = wconv * s[:, None]
        b_eff = s * (bconv - mu) + bt
        pre_scale = jnp.ones((Cs,), f32)
        pre_shift = jnp.zeros((Cs,), f32)
        post_elu = True

    # Block-diagonal weights: L[(o,h),(h',cs)] = W_eff[o,cs] * delta(h,h').
    # One matmul then yields 8 output rows already in (channel, row) order.
    eye8 = jnp.eye(8, dtype=f32)
    L = jnp.einsum('oc,hk->ohkc', w_eff, eye8).reshape(C * 8, 8 * Cs)
    if mxu_bf16:
        L = L.astype(jnp.bfloat16)
    b_rows = jnp.repeat(b_eff, 8).reshape(C * 8, 1)
    ps_rows = jnp.tile(pre_scale, 8).reshape(8 * Cs, 1)
    pt_rows = jnp.tile(pre_shift, 8).reshape(8 * Cs, 1)

    # ---- tiling: sized against the real chip's VMEM, real dtype sizes ----
    vmem_cap = _vmem_capacity_bytes()
    in_bytes = x.dtype.itemsize
    out_bytes = x.dtype.itemsize
    w_bytes = 2 if mxu_bf16 else 4
    cout_t, G = _choose_tiling(C, Cs, Hr, Wr, N, in_bytes, out_bytes,
                               w_bytes, vmem_cap)
    n_co = _cdiv(C, cout_t)
    n_rows = _cdiv(Hr, 8 * G)
    mask_rows = (Hr % 8 != 0)

    kernel = functools.partial(
        _ps_conv_bn_elu_kernel,
        cs=Cs, groups=G, preact=preact, post_elu=post_elu,
        mxu_bf16=mxu_bf16, hr=Hr, mask_rows=mask_rows)

    out = pl.pallas_call(
        kernel,
        out_shape=jax.ShapeDtypeStruct((N, C, Hr, Wr), x.dtype),
        grid=(N, n_co, n_rows),
        in_specs=[
            pl.BlockSpec((cout_t * 8, 8 * Cs), lambda n, jc, jr: (jc, 0)),
            pl.BlockSpec((cout_t * 8, 1), lambda n, jc, jr: (jc, 0)),
            pl.BlockSpec((8 * Cs, 1), lambda n, jc, jr: (0, 0)),
            pl.BlockSpec((8 * Cs, 1), lambda n, jc, jr: (0, 0)),
            pl.BlockSpec((None, 8 * G * Cs, Wr), lambda n, jc, jr: (n, jr, 0)),
        ],
        out_specs=pl.BlockSpec((None, cout_t, 8 * G, Wr),
                               lambda n, jc, jr: (n, jc, jr, 0)),
        compiler_params=pltpu.CompilerParams(
            dimension_semantics=("parallel", "parallel", "parallel"),
            vmem_limit_bytes=int(vmem_cap * 0.6)),
    )(L, b_rows, ps_rows, pt_rows, xst)
    return out


class PixelShuffleUpSampling:
    """JAX/Pallas port of researchlib _PixelShuffleUpSampling (eval-mode BN)."""
    # TODO(synk): training-mode BatchNorm (batch statistics + running-stat
    # updates) is not implemented; BN uses running stats.

    def __init__(self, in_dim, pooling_factor, preact=False, *, key=None,
                 dtype=jnp.float32):
        r = int(pooling_factor)
        cs = in_dim // (r * r)
        assert cs * r * r == in_dim
        self.in_dim, self.r, self.preact, self.eps = in_dim, r, preact, 1e-5
        key = jax.random.PRNGKey(0) if key is None else key
        k1, k2, k3, k4, k5, k6 = jax.random.split(key, 6)
        bound = 1.0 / (cs ** 0.5)
        self.conv_w = jax.random.uniform(k1, (in_dim, cs), dtype, -bound, bound)
        self.conv_b = jax.random.uniform(k2, (in_dim,), dtype, -bound, bound)
        bn_ch = cs if preact else in_dim
        self.gamma = 1.0 + 0.1 * jax.random.normal(k3, (bn_ch,), dtype)
        self.beta = 0.1 * jax.random.normal(k4, (bn_ch,), dtype)
        self.running_mean = 0.1 * jax.random.normal(k5, (bn_ch,), dtype)
        self.running_var = jnp.abs(
            1.0 + 0.1 * jax.random.normal(k6, (bn_ch,), dtype))

    def __call__(self, x, mxu_bf16=False):
        return pixel_shuffle_upsample_pallas(
            x, self.conv_w, self.conv_b, self.gamma, self.beta,
            self.running_mean, self.running_var, self.r,
            preact=self.preact, eps=self.eps, mxu_bf16=mxu_bf16)


def _elu_ref(v):
    return jnp.where(v > 0, v, jnp.exp(v) - 1.0)


def reference_forward(x, mod):
    r = mod.r
    N, C, H, W = x.shape
    Cs = C // (r * r)
    xs = x.reshape(N, Cs, r, r, H, W).transpose(0, 1, 4, 2, 5, 3)
    xs = xs.reshape(N, Cs, H * r, W * r)

    def bn(v, gm, bt, mu, vr):
        return ((v - mu[None, :, None, None])
                / jnp.sqrt(vr + mod.eps)[None, :, None, None]
                * gm[None, :, None, None] + bt[None, :, None, None])

    if mod.preact:
        a = _elu_ref(bn(xs, mod.gamma, mod.beta,
                        mod.running_mean, mod.running_var))
        return (jnp.einsum('oc,nchw->nohw', mod.conv_w, a)
                + mod.conv_b[None, :, None, None])
    y = (jnp.einsum('oc,nchw->nohw', mod.conv_w, xs)
         + mod.conv_b[None, :, None, None])
    y = bn(y, mod.gamma, mod.beta, mod.running_mean, mod.running_var)
    return _elu_ref(y)


if __name__ == "__main__":
    root = jax.random.PRNGKey(0)
    cases = [
        # (N, in_dim, H,  W,  r, preact, mxu_bf16, tol)
        (2, 16, 16, 16, 2, False, False, 1e-4),
        (2, 16, 16, 16, 2, True,  False, 1e-4),
        (1, 16,  6, 16, 2, False, False, 1e-4),   # Hr=12: ragged rows + N=1
        (2, 16,  8,  8, 4, True,  False, 1e-4),   # r=4 -> Cs=1
        (2, 16, 16, 16, 2, False, True,  5e-2),   # bf16 MXU operands
    ]
    for idx, (N, in_dim, H, W, r, preact, mxu_bf16, tol) in enumerate(cases):
        kx, kp = jax.random.split(jax.random.fold_in(root, idx))
        x = jax.random.normal(kx, (N, in_dim, H, W), dtype=jnp.float32)
        mod = PixelShuffleUpSampling(in_dim, r, preact=preact, key=kp)
        y = jax.block_until_ready(mod(x, mxu_bf16=mxu_bf16))
        ref = reference_forward(x, mod)
        assert y.shape == (N, in_dim, H * r, W * r)
        assert y.dtype == x.dtype
        err = float(jnp.max(jnp.abs(y - ref)))
        assert jnp.allclose(y, ref, atol=tol, rtol=tol), (idx, err)
    print("KERNEL_OK")
</pallas_src>

<mosaic_0001>
module attributes {stable_mosaic.version = 11 : i64} {
  func.func @_ps_conv_bn_elu_kernel(%arg0: i32, %arg1: i32, %arg2: i32, %arg3: memref<128x32xf32, #tpu.memory_space<vmem>>, %arg4: memref<128x1xf32, #tpu.memory_space<vmem>>, %arg5: memref<32x1xf32, #tpu.memory_space<vmem>>, %arg6: memref<32x1xf32, #tpu.memory_space<vmem>>, %arg7: memref<1x128x32xf32, #tpu.memory_space<vmem>>, %arg8: memref<1x16x32x32xf32, #tpu.memory_space<vmem>>) attributes {dimension_semantics = [#tpu.dimension_semantics<parallel>, #tpu.dimension_semantics<parallel>, #tpu.dimension_semantics<parallel>], iteration_bounds = array<i64: 2, 1, 1>, scalar_prefetch = 0 : i64, scratch_operands = 0 : i64, tpu.core_type = #tpu.core_type<tc>, window_params = [{transform_indices = @transform_0, window_bounds = array<i64: 128, 32>}, {transform_indices = @transform_1, window_bounds = array<i64: 128, 1>}, {pipeline_mode = #tpu.pipeline_mode<synchronous>, transform_indices = @transform_2, window_bounds = array<i64: 32, 1>}, {pipeline_mode = #tpu.pipeline_mode<synchronous>, transform_indices = @transform_3, window_bounds = array<i64: 32, 1>}, {transform_indices = @transform_4, window_bounds = array<i64: 1, 128, 32>}, {transform_indices = @transform_5, window_bounds = array<i64: 1, 16, 32, 32>}]} {
    %c0 = arith.constant 0 : index
    %c0_0 = arith.constant 0 : index
    %0 = vector.load %arg3[%c0, %c0_0] : memref<128x32xf32, #tpu.memory_space<vmem>>, vector<128x32xf32>
    %c0_1 = arith.constant 0 : index
    %c0_2 = arith.constant 0 : index
    %1 = vector.load %arg4[%c0_1, %c0_2] : memref<128x1xf32, #tpu.memory_space<vmem>>, vector<128x1xf32>
    %c0_3 = arith.constant 0 : index
    %c0_4 = arith.constant 0 : index
    %c0_5 = arith.constant 0 : index
    %2 = vector.load %arg7[%c0_3, %c0_4, %c0_5] : memref<1x128x32xf32, #tpu.memory_space<vmem>>, vector<1x32x32xf32>
    %3 = vector.shape_cast %2 : vector<1x32x32xf32> to vector<32x32xf32>
    %cst = arith.constant dense<0.000000e+00> : vector<128x32xf32>
    %4 = tpu.matmul %0, %3, %cst {dimension_numbers = #tpu.dot_dimension_numbers<[1], [0], [0], [1], [0, 0, 1, 1], [], []>} : vector<128x32xf32>, vector<32x32xf32>, vector<128x32xf32> -> vector<128x32xf32>
    %5 = vector.broadcast %1 : vector<128x1xf32> to vector<128x32xf32>
    %6 = arith.addf %4, %5 : vector<128x32xf32>
    %cst_6 = arith.constant 0.000000e+00 : f32
    %7 = vector.broadcast %cst_6 : f32 to vector<128x32xf32>
    %8 = arith.cmpf ogt, %6, %7 : vector<128x32xf32>
    %cst_7 = arith.constant 0.000000e+00 : f32
    %9 = vector.broadcast %cst_7 : f32 to vector<128x32xf32>
    %10 = arith.minimumf %6, %9 : vector<128x32xf32>
    %11 = math.exp %10 : vector<128x32xf32>
    %cst_8 = arith.constant 1.000000e+00 : f32
    %12 = vector.broadcast %cst_8 : f32 to vector<128x32xf32>
    %13 = arith.subf %11, %12 : vector<128x32xf32>
    %14 = arith.select %8, %6, %13 : vector<128x32xi1>, vector<128x32xf32>
    %15 = vector.shape_cast %14 : vector<128x32xf32> to vector<16x8x32xf32>
    %c0_9 = arith.constant 0 : index
    %c0_10 = arith.constant 0 : index
    %c0_11 = arith.constant 0 : index
    %c0_12 = arith.constant 0 : index
    %16 = vector.load %arg8[%c0_9, %c0_10, %c0_11, %c0_12] : memref<1x16x32x32xf32, #tpu.memory_space<vmem>>, vector<1x16x8x32xf32>
    %17 = vector.shape_cast %16 : vector<1x16x8x32xf32> to vector<16x8x32xf32>
    %18 = vector.shape_cast %15 : vector<16x8x32xf32> to vector<1x16x8x32xf32>
    tpu.vector_store %arg8[%c0_9, %c0_10, %c0_11, %c0_12], %18 {strides = array<i32>} : memref<1x16x32x32xf32, #tpu.memory_space<vmem>>, vector<1x16x8x32xf32>,
    %c0_13 = arith.constant 0 : index
    %c32 = arith.constant 32 : index
    %c0_14 = arith.constant 0 : index
    %19 = vector.load %arg7[%c0_13, %c32, %c0_14] : memref<1x128x32xf32, #tpu.memory_space<vmem>>, vector<1x32x32xf32>
    %20 = vector.shape_cast %19 : vector<1x32x32xf32> to vector<32x32xf32>
    %cst_15 = arith.constant dense<0.000000e+00> : vector<128x32xf32>
    %21 = tpu.matmul %0, %20, %cst_15 {dimension_numbers = #tpu.dot_dimension_numbers<[1], [0], [0], [1], [0, 0, 1, 1], [], []>} : vector<128x32xf32>, vector<32x32xf32>, vector<128x32xf32> -> vector<128x32xf32>
    %22 = vector.broadcast %1 : vector<128x1xf32> to vector<128x32xf32>
    %23 = arith.addf %21, %22 : vector<128x32xf32>
    %cst_16 = arith.constant 0.000000e+00 : f32
    %24 = vector.broadcast %cst_16 : f32 to vector<128x32xf32>
    %25 = arith.cmpf ogt, %23, %24 : vector<128x32xf32>
    %cst_17 = arith.constant 0.000000e+00 : f32
    %26 = vector.broadcast %cst_17 : f32 to vector<128x32xf32>
    %27 = arith.minimumf %23, %26 : vector<128x32xf32>
    %28 = math.exp %27 : vector<128x32xf32>
    %cst_18 = arith.constant 1.000000e+00 : f32
    %29 = vector.broadcast %cst_18 : f32 to vector<128x32xf32>
    %30 = arith.subf %28, %29 : vector<128x32xf32>
    %31 = arith.select %25, %23, %30 : vector<128x32xi1>, vector<128x32xf32>
    %32 = vector.shape_cast %31 : vector<128x32xf32> to vector<16x8x32xf32>
    %c0_19 = arith.constant 0 : index
    %c0_20 = arith.constant 0 : index
    %c8 = arith.constant 8 : index
    %c0_21 = arith.constant 0 : index
    %33 = vector.load %arg8[%c0_19, %c0_20, %c8, %c0_21] : memref<1x16x32x32xf32, #tpu.memory_space<vmem>>, vector<1x16x8x32xf32>
    %34 = vector.shape_cast %33 : vector<1x16x8x32xf32> to vector<16x8x32xf32>
    %35 = vector.shape_cast %32 : vector<16x8x32xf32> to vector<1x16x8x32xf32>
    tpu.vector_store %arg8[%c0_19, %c0_20, %c8, %c0_21], %35 {strides = array<i32>} : memref<1x16x32x32xf32, #tpu.memory_space<vmem>>, vector<1x16x8x32xf32>,
    %c0_22 = arith.constant 0 : index
    %c64 = arith.constant 64 : index
    %c0_23 = arith.constant 0 : index
    %36 = vector.load %arg7[%c0_22, %c64, %c0_23] : memref<1x128x32xf32, #tpu.memory_space<vmem>>, vector<1x32x32xf32>
    %37 = vector.shape_cast %36 : vector<1x32x32xf32> to vector<32x32xf32>
    %cst_24 = arith.constant dense<0.000000e+00> : vector<128x32xf32>
    %38 = tpu.matmul %0, %37, %cst_24 {dimension_numbers = #tpu.dot_dimension_numbers<[1], [0], [0], [1], [0, 0, 1, 1], [], []>} : vector<128x32xf32>, vector<32x32xf32>, vector<128x32xf32> -> vector<128x32xf32>
    %39 = vector.broadcast %1 : vector<128x1xf32> to vector<128x32xf32>
    %40 = arith.addf %38, %39 : vector<128x32xf32>
    %cst_25 = arith.constant 0.000000e+00 : f32
    %41 = vector.broadcast %cst_25 : f32 to vector<128x32xf32>
    %42 = arith.cmpf ogt, %40, %41 : vector<128x32xf32>
    %cst_26 = arith.constant 0.000000e+00 : f32
    %43 = vector.broadcast %cst_26 : f32 to vector<128x32xf32>
    %44 = arith.minimumf %40, %43 : vector<128x32xf32>
    %45 = math.exp %44 : vector<128x32xf32>
    %cst_27 = arith.constant 1.000000e+00 : f32
    %46 = vector.broadcast %cst_27 : f32 to vector<128x32xf32>
    %47 = arith.subf %45, %46 : vector<128x32xf32>
    %48 = arith.select %42, %40, %47 : vector<128x32xi1>, vector<128x32xf32>
    %49 = vector.shape_cast %48 : vector<128x32xf32> to vector<16x8x32xf32>
    %c0_28 = arith.constant 0 : index
    %c0_29 = arith.constant 0 : index
    %c16 = arith.constant 16 : index
    %c0_30 = arith.constant 0 : index
    %50 = vector.load %arg8[%c0_28, %c0_29, %c16, %c0_30] : memref<1x16x32x32xf32, #tpu.memory_space<vmem>>, vector<1x16x8x32xf32>
    %51 = vector.shape_cast %50 : vector<1x16x8x32xf32> to vector<16x8x32xf32>
    %52 = vector.shape_cast %49 : vector<16x8x32xf32> to vector<1x16x8x32xf32>
    tpu.vector_store %arg8[%c0_28, %c0_29, %c16, %c0_30], %52 {strides = array<i32>} : memref<1x16x32x32xf32, #tpu.memory_space<vmem>>, vector<1x16x8x32xf32>,
    %c0_31 = arith.constant 0 : index
    %c96 = arith.constant 96 : index
    %c0_32 = arith.constant 0 : index
    %53 = vector.load %arg7[%c0_31, %c96, %c0_32] : memref<1x128x32xf32, #tpu.memory_space<vmem>>, vector<1x32x32xf32>
    %54 = vector.shape_cast %53 : vector<1x32x32xf32> to vector<32x32xf32>
    %cst_33 = arith.constant dense<0.000000e+00> : vector<128x32xf32>
    %55 = tpu.matmul %0, %54, %cst_33 {dimension_numbers = #tpu.dot_dimension_numbers<[1], [0], [0], [1], [0, 0, 1, 1], [], []>} : vector<128x32xf32>, vector<32x32xf32>, vector<128x32xf32> -> vector<128x32xf32>
    %56 = vector.broadcast %1 : vector<128x1xf32> to vector<128x32xf32>
    %57 = arith.addf %55, %56 : vector<128x32xf32>
    %cst_34 = arith.constant 0.000000e+00 : f32
    %58 = vector.broadcast %cst_34 : f32 to vector<128x32xf32>
    %59 = arith.cmpf ogt, %57, %58 : vector<128x32xf32>
    %cst_35 = arith.constant 0.000000e+00 : f32
    %60 = vector.broadcast %cst_35 : f32 to vector<128x32xf32>
    %61 = arith.minimumf %57, %60 : vector<128x32xf32>
    %62 = math.exp %61 : vector<128x32xf32>
    %cst_36 = arith.constant 1.000000e+00 : f32
    %63 = vector.broadcast %cst_36 : f32 to vector<128x32xf32>
    %64 = arith.subf %62, %63 : vector<128x32xf32>
    %65 = arith.select %59, %57, %64 : vector<128x32xi1>, vector<128x32xf32>
    %66 = vector.shape_cast %65 : vector<128x32xf32> to vector<16x8x32xf32>
    %c0_37 = arith.constant 0 : index
    %c0_38 = arith.constant 0 : index
    %c24 = arith.constant 24 : index
    %c0_39 = arith.constant 0 : index
    %67 = vector.load %arg8[%c0_37, %c0_38, %c24, %c0_39] : memref<1x16x32x32xf32, #tpu.memory_space<vmem>>, vector<1x16x8x32xf32>
    %68 = vector.shape_cast %67 : vector<1x16x8x32xf32> to vector<16x8x32xf32>
    %69 = vector.shape_cast %66 : vector<16x8x32xf32> to vector<1x16x8x32xf32>
    tpu.vector_store %arg8[%c0_37, %c0_38, %c24, %c0_39], %69 {strides = array<i32>} : memref<1x16x32x32xf32, #tpu.memory_space<vmem>>, vector<1x16x8x32xf32>,
    return
  }
  func.func @transform_0(%arg0: i32, %arg1: i32, %arg2: i32) -> (i32, i32) {
    %c0_i32 = arith.constant 0 : i32
    %c0_i32_0 = arith.constant 0 : i32
    return %arg1, %c0_i32 : i32, i32
  }
  func.func @transform_1(%arg0: i32, %arg1: i32, %arg2: i32) -> (i32, i32) {
    %c0_i32 = arith.constant 0 : i32
    %c0_i32_0 = arith.constant 0 : i32
    return %arg1, %c0_i32 : i32, i32
  }
  func.func @transform_2(%arg0: i32, %arg1: i32, %arg2: i32) -> (i32, i32) {
    %c0_i32 = arith.constant 0 : i32
    %c0_i32_0 = arith.constant 0 : i32
    %c0_i32_1 = arith.constant 0 : i32
    return %c0_i32, %c0_i32_0 : i32, i32
  }
  func.func @transform_3(%arg0: i32, %arg1: i32, %arg2: i32) -> (i32, i32) {
    %c0_i32 = arith.constant 0 : i32
    %c0_i32_0 = arith.constant 0 : i32
    %c0_i32_1 = arith.constant 0 : i32
    return %c0_i32, %c0_i32_0 : i32, i32
  }
  func.func @transform_4(%arg0: i32, %arg1: i32, %arg2: i32) -> (i32, i32, i32) {
    %c0_i32 = arith.constant 0 : i32
    %c0_i32_0 = arith.constant 0 : i32
    return %arg0, %arg2, %c0_i32 : i32, i32, i32
  }
  func.func @transform_5(%arg0: i32, %arg1: i32, %arg2: i32) -> (i32, i32, i32, i32) {
    %c0_i32 = arith.constant 0 : i32
    %c0_i32_0 = arith.constant 0 : i32
    return %arg0, %arg1, %arg2, %c0_i32 : i32, i32, i32, i32
  }
}

</mosaic_0001>

<llo_original>
// kernel: tpu_custom_call.1
$region0: #{tpu_custom_call.1}
  #allocation0 [shape = 'u32[]', space=smem, size = 0x4, offset = 0x4, fixed_abs, tag = 'smem constant byte address 0x4 - core index']
  #allocation1 [shape = 'u32[144,128]{1,0:T(1,128)}', space=vmem, size = 0x12000, scoped, tag = 'internal scratch']
  %s0 = inlined_call_operand.vmem [shape: f32[128,32], index: 0, kind: input, shape index: {}]
  %s1 = inlined_call_operand.vmem [shape: f32[128,1], index: 1, kind: input, shape index: {}]
  %s2 = inlined_call_operand.vmem [shape: f32[32,1], index: 2, kind: input, shape index: {}]
  %s3 = inlined_call_operand.vmem [shape: f32[32,1], index: 3, kind: input, shape index: {}]
  %s4 = inlined_call_operand.vmem [shape: f32[2,128,32], index: 4, kind: input, shape index: {}]
  %s5 = inlined_call_operand.hbm [shape: f32[2,16,32,32], index: 5, kind: output, shape index: {}]
  %s6 = sld [smem:[#allocation0]]
  $region53: #{tpu_custom_call.1} parent=0
    _
  %s8 = ssub.s32 1, %s6
  %s9 = scalar_select 0, %s8, %s6
  $region1: #{tpu_custom_call.1} parent=0
    #allocation2 [shape = 'u8[524288]{0}', space=vmem, size = 0x80000, scoped, tag = 'output window, operand 0']
    #allocation3 [shape = 's32[2]{0}', space=sflag, size = 0x8, scoped, tag = 'scoped memory for tpu_custom_call.1']
    %10 = vsyncpa [#allocation3], 0
    %s11 = scalar_lea.sflag [#allocation3], 1
    %12 = vsyncpa %s11, 0
    loop: start=0, step=1, limit=4
    $region2: #{tpu_custom_call.1} parent=1 // loop_pre_header
      _
    $region3: #{tpu_custom_call.1} parent=1 // loop_header
      %s14 = sphi 0, %s18
      %p15 = scmp.ge.s32.totalorder %s14, 4
      %s21 = sphi 0, %s40
      %s22 = sphi 0, %s36
      %s23 = sphi 0, %s32
      %s24 = sphi 0, %s21
      %s25 = sphi 0, %s22
      %s26 = sphi 0, %s23
      %s27 = sphi 0, %s24
      %s28 = sphi 0, %s25
      %s29 = sphi 0, %s26
      %s43 = sphi 0, %s45
      %s46 = sphi 0, %s43
      %s47 = sphi 0, %s46
      %s63 = sphi 0, %s47
      %s69 = sphi 0, %s71
      %s72 = sphi 0, %s69
      %s73 = sphi 0, %s72
      %s89 = sphi 0, %s73
      %s93 = sphi 0, %s93
      %s95 = sphi 0, %s93
      %s96 = sphi 0, %s95
      %s110 = sphi 0, %s96
      %s114 = sphi 0, %s114
      %s116 = sphi 0, %s114
      %s117 = sphi 0, %s116
      %s131 = sphi 0, %s117
      %s139 = sphi 0, %s141
      %s142 = sphi 0, %s139
      %s143 = sphi 0, %s142
      %s159 = sphi 0, %s143
      %s169 = sphi 0, %s171
      %s172 = sphi 0, %s169
      %s173 = sphi 0, %s172
      %s189 = sphi 0, %s173
    $region4: #{tpu_custom_call.1} parent=1 // loop_header_branch
      %17 = sbr.rel (%p15) target = $region8
    $region5: #{tpu_custom_call.1} parent=1 // loop_body
      %s19 = ssub.s32 %s14, 1
      %s20 = ssub.s32 %s14, 2
      %s30 = sadd.s32 1, %s23
      %p31 = scmp.ge.s32.totalorder %s30, 1
      %s32 = scalar_select %p31, 0, %s30
      %s33 = sadd.s32 1, %s22
      %s34 = scalar_select %p31, %s33, %s22
      %p35 = scmp.ge.s32.totalorder %s34, 1
      %s36 = scalar_select %p35, 0, %s34
      %s37 = sadd.s32 1, %s21
      %s38 = scalar_select %p35, %s37, %s21
      %p39 = scmp.ge.s32.totalorder %s38, 2
      %s40 = scalar_select %p39, 0, %s38
      %s41 = ssub.s32 %s22, %s36
      %p42 = scmp.eq.s32.totalorder %s41, 0
      %s44 = sadd.s32 %s43, 1
      %s45 = scalar_select %p42, %s43, %s44
      %p48 = pneg %p42
      %p49 = scmp.eq.s32.totalorder %s14, 1
      %p50 = por %p48, %p49
      %p51 = scmp.ne.s32.totalorder %s43, %s46
      %p52 = scmp.eq.s32.totalorder %s14, 0
      %p53 = por %p51, %p52
      %p54 = scmp.ne.s32.totalorder %s43, %s46
      %p55 = scmp.eq.s32.totalorder %s19, 1
      %p56 = por %p54, %p55
      %p57 = scmp.ne.s32.totalorder %s46, %s47
      %p58 = scmp.eq.s32.totalorder %s19, 0
      %p59 = por %p57, %p58
      %p60 = scmp.ne.s32.totalorder %s46, %s47
      %p61 = scmp.eq.s32.totalorder %s20, 1
      %p62 = por %p60, %p61
      %p64 = scmp.ne.s32.totalorder %s47, %s63
      %p65 = scmp.eq.s32.totalorder %s20, 0
      %p66 = por %p64, %p65
      %s67 = ssub.s32 %s22, %s36
      %p68 = scmp.eq.s32.totalorder %s67, 0
      %s70 = sadd.s32 %s69, 1
      %s71 = scalar_select %p68, %s69, %s70
      %p74 = pneg %p68
      %p75 = scmp.eq.s32.totalorder %s14, 1
      %p76 = por %p74, %p75
      %p77 = scmp.ne.s32.totalorder %s69, %s72
      %p78 = scmp.eq.s32.totalorder %s14, 0
      %p79 = por %p77, %p78
      %p80 = scmp.ne.s32.totalorder %s69, %s72
      %p81 = scmp.eq.s32.totalorder %s19, 1
      %p82 = por %p80, %p81
      %p83 = scmp.ne.s32.totalorder %s72, %s73
      %p84 = scmp.eq.s32.totalorder %s19, 0
      %p85 = por %p83, %p84
      %p86 = scmp.ne.s32.totalorder %s72, %s73
      %p87 = scmp.eq.s32.totalorder %s20, 1
      %p88 = por %p86, %p87
      %p90 = scmp.ne.s32.totalorder %s73, %s89
      %p91 = scmp.eq.s32.totalorder %s20, 0
      %p92 = por %p90, %p91
      %s94 = sadd.s32 %s93, 1
      %p97 = scmp.eq.s32.totalorder %s14, 1
      %p98 = scmp.ne.s32.totalorder %s93, %s95
      %p99 = scmp.eq.s32.totalorder %s14, 0
      %p100 = por %p98, %p99
      %p101 = scmp.ne.s32.totalorder %s93, %s95
      %p102 = scmp.eq.s32.totalorder %s19, 1
      %p103 = por %p101, %p102
      %p104 = scmp.ne.s32.totalorder %s95, %s96
      %p105 = scmp.eq.s32.totalorder %s19, 0
      %p106 = por %p104, %p105
      %p107 = scmp.ne.s32.totalorder %s95, %s96
      %p108 = scmp.eq.s32.totalorder %s20, 1
      %p109 = por %p107, %p108
      %p111 = scmp.ne.s32.totalorder %s96, %s110
      %p112 = scmp.eq.s32.totalorder %s20, 0
      %p113 = por %p111, %p112
      %s115 = sadd.s32 %s114, 1
      %p118 = scmp.eq.s32.totalorder %s14, 1
      %p119 = scmp.ne.s32.totalorder %s114, %s116
      %p120 = scmp.eq.s32.totalorder %s14, 0
      %p121 = por %p119, %p120
      %p122 = scmp.ne.s32.totalorder %s114, %s116
      %p123 = scmp.eq.s32.totalorder %s19, 1
      %p124 = por %p122, %p123
      %p125 = scmp.ne.s32.totalorder %s116, %s117
      %p126 = scmp.eq.s32.totalorder %s19, 0
      %p127 = por %p125, %p126
      %p128 = scmp.ne.s32.totalorder %s116, %s117
      %p129 = scmp.eq.s32.totalorder %s20, 1
      %p130 = por %p128, %p129
      %p132 = scmp.ne.s32.totalorder %s117, %s131
      %p133 = scmp.eq.s32.totalorder %s20, 0
      %p134 = por %p132, %p133
      %s135 = ssub.s32 %s21, %s40
      %s136 = ssub.s32 %s23, %s32
      %s137 = sor.u32 %s135, %s136
      %p138 = scmp.eq.s32.totalorder %s137, 0
      %s140 = sadd.s32 %s139, 1
      %s141 = scalar_select %p138, %s139, %s140
      %p144 = pneg %p138
      %p145 = scmp.eq.s32.totalorder %s14, 1
      %p146 = por %p144, %p145
      %p147 = scmp.ne.s32.totalorder %s139, %s142
      %p148 = scmp.eq.s32.totalorder %s14, 0
      %p149 = por %p147, %p148
      %p150 = scmp.ne.s32.totalorder %s139, %s142
      %p151 = scmp.eq.s32.totalorder %s19, 1
      %p152 = por %p150, %p151
      %p153 = scmp.ne.s32.totalorder %s142, %s143
      %p154 = scmp.eq.s32.totalorder %s19, 0
      %p155 = por %p153, %p154
      %p156 = scmp.ne.s32.totalorder %s142, %s143
      %p157 = scmp.eq.s32.totalorder %s20, 1
      %p158 = por %p156, %p157
      %p160 = scmp.ne.s32.totalorder %s143, %s159
      %p161 = scmp.eq.s32.totalorder %s20, 0
      %p162 = por %p160, %p161
      %s163 = ssub.s32 %s21, %s40
      %s164 = ssub.s32 %s22, %s36
      %s165 = sor.u32 %s163, %s164
      %s166 = ssub.s32 %s23, %s32
      %s167 = sor.u32 %s165, %s166
      %p168 = scmp.eq.s32.totalorder %s167, 0
      %s170 = sadd.s32 %s169, 1
      %s171 = scalar_select %p168, %s169, %s170
      %p174 = pneg %p168
      %p175 = scmp.eq.s32.totalorder %s14, 1
      %p176 = por %p174, %p175
      %p177 = scmp.ne.s32.totalorder %s169, %s172
      %p178 = scmp.eq.s32.totalorder %s14, 0
      %p179 = por %p177, %p178
      %p180 = scmp.ne.s32.totalorder %s169, %s172
      %p181 = scmp.eq.s32.totalorder %s19, 1
      %p182 = por %p180, %p181
      %p183 = scmp.ne.s32.totalorder %s172, %s173
      %p184 = scmp.eq.s32.totalorder %s19, 0
      %p185 = por %p183, %p184
      %p186 = scmp.ne.s32.totalorder %s172, %s173
      %p187 = scmp.eq.s32.totalorder %s20, 1
      %p188 = por %p186, %p187
      %p190 = scmp.ne.s32.totalorder %s173, %s189
      %p191 = scmp.eq.s32.totalorder %s20, 0
      %p192 = por %p190, %p191
      %p193 = scmp.le.s32.totalorder 1, %s14
      %p194 = scmp.lt.s32.totalorder %s14, 3
      %p195 = pnand %p193, %p194
      %p196 = pneg %p195
      // Predicated region
      $region9: #{tpu_custom_call.1} parent=5 // pred_check
        _
      $region10: #{tpu_custom_call.1} parent=5 // pred_check_branch
        %198 = sbr.rel (%p195) target = $region12
      $region11: #{tpu_custom_call.1} parent=5 // pred_region
        %s199 = ssub.s32 %s14, 1
        // Predicated region
        $region13: #{tpu_custom_call.1} parent=11 // pred_check
          %p200 = pneg %p59
        $region14: #{tpu_custom_call.1} parent=11 // pred_check_branch
          %202 = sbr.rel (%p200) target = $region16
        $region15: #{tpu_custom_call.1} parent=11 // pred_region
          %s203 = smul.u32 16, %s25
          %p204 = scmp.lt.s32.totalorder %s203, 15
          %s205 = scalar_select %p204, %s203, 15
          %s206 = smul.addr %s205, 8
          %s207 = scalar_lea.vmem %s0, %s206
          %s208 = smul.u32 16, %s25
        $region16: #{tpu_custom_call.1} parent=11 // pred_fallthru
          _
        // Predicated region
        $region17: #{tpu_custom_call.1} parent=11 // pred_check
          %p209 = pneg %p85
        $region18: #{tpu_custom_call.1} parent=11 // pred_check_branch
          %211 = sbr.rel (%p209) target = $region20
        $region19: #{tpu_custom_call.1} parent=11 // pred_region
          %s212 = smul.u32 16, %s25
          %p213 = scmp.lt.s32.totalorder %s212, 15
          %s214 = scalar_select %p213, %s212, 15
          %s215 = smul.addr %s214, 8
          %s216 = scalar_lea.vmem %s1, %s215
          %s217 = smul.u32 16, %s25
        $region20: #{tpu_custom_call.1} parent=11 // pred_fallthru
          _
        // Predicated region
        $region21: #{tpu_custom_call.1} parent=11 // pred_check
          %p218 = pneg %p106
        $region22: #{tpu_custom_call.1} parent=11 // pred_check_branch
          %220 = sbr.rel (%p218) target = $region24
        $region23: #{tpu_custom_call.1} parent=11 // pred_region
          _
        $region24: #{tpu_custom_call.1} parent=11 // pred_fallthru
          _
        // Predicated region
        $region25: #{tpu_custom_call.1} parent=11 // pred_check
          %p221 = pneg %p127
        $region26: #{tpu_custom_call.1} parent=11 // pred_check_branch
          %223 = sbr.rel (%p221) target = $region28
        $region27: #{tpu_custom_call.1} parent=11 // pred_region
          _
        $region28: #{tpu_custom_call.1} parent=11 // pred_fallthru
          _
      $region12: #{tpu_custom_call.1} parent=5 // pred_fallthru
        _
      %p224 = scmp.lt.s32.totalorder %s14, 2
      // Predicated region
      $region29: #{tpu_custom_call.1} parent=5 // pred_check
        %p225 = pneg %p224
      $region30: #{tpu_custom_call.1} parent=5 // pred_check_branch
        %227 = sbr.rel (%p225) target = $region32
      $region31: #{tpu_custom_call.1} parent=5 // pred_region
        // Predicated region
        $region33: #{tpu_custom_call.1} parent=31 // pred_check
          %p228 = pneg %p149
        $region34: #{tpu_custom_call.1} parent=31 // pred_check_branch
          %230 = sbr.rel (%p228) target = $region36
        $region35: #{tpu_custom_call.1} parent=31 // pred_region
          %s231 = smul.u32 16, %s23
          %p232 = scmp.lt.s32.totalorder %s21, 1
          %s233 = scalar_select %p232, %s21, 1
          %p234 = scmp.lt.s32.totalorder %s231, 15
          %s235 = scalar_select %p234, %s231, 15
          %s236 = smul.addr %s233, 16
          %s237 = sadd.s32 %s235, %s236
          %s238 = smul.addr %s237, 8
          %s239 = scalar_lea.vmem %s4, %s238
          %s240 = smul.u32 16, %s23
        $region36: #{tpu_custom_call.1} parent=31 // pred_fallthru
          _
      $region32: #{tpu_custom_call.1} parent=5 // pred_fallthru
        _
      %p241 = scmp.le.s32.totalorder 1, %s14
      %p242 = scmp.lt.s32.totalorder %s14, 3
      %p243 = pnand %p241, %p242
      %p244 = pneg %p243
      // Predicated region
      $region37: #{tpu_custom_call.1} parent=5 // pred_check
        _
      $region38: #{tpu_custom_call.1} parent=5 // pred_check_branch
        %246 = sbr.rel (%p243) target = $region40
      $region39: #{tpu_custom_call.1} parent=5 // pred_region
        %s247 = ssub.s32 %s14, 1
        %s248 = smul.u32 16, %s25
        %p249 = scmp.lt.s32.totalorder %s248, 15
        %s250 = scalar_select %p249, %s248, 15
        %s251 = smul.addr %s250, 8
        %s252 = scalar_lea.vmem %s0, %s251
        %p253 = pneg %p59
        %p254 = pneg %p56
        %s255 = smul.u32 16, %s25
        %p256 = scmp.lt.s32.totalorder %s255, 15
        %s257 = scalar_select %p256, %s255, 15
        %s258 = smul.addr %s257, 8
        %s259 = scalar_lea.vmem %s1, %s258
        %p260 = pneg %p85
        %p261 = pneg %p82
        %p262 = pneg %p106
        %p263 = pneg %p103
        %p264 = pneg %p127
        %p265 = pneg %p124
        %s266 = smul.u32 16, %s26
        %p267 = scmp.lt.s32.totalorder %s24, 1
        %s268 = scalar_select %p267, %s24, 1
        %p269 = scmp.lt.s32.totalorder %s266, 15
        %s270 = scalar_select %p269, %s266, 15
        %s271 = smul.addr %s268, 16
        %s272 = sadd.s32 %s270, %s271
        %s273 = smul.addr %s272, 8
        %s274 = scalar_lea.vmem %s4, %s273
        %p275 = pneg %p155
        %p276 = pneg %p152
        %p277 = pneg %p185
        %p278 = pneg %p182
        %s279 = sand.u32 %s172, 1
        %s280 = scalar_lea.sflag [#allocation3], %s279
        %s281 = sand.u32 %s172, 1
        %s282 = smul.addr %s281, 512
        %s283 = scalar_lea.vmem [#allocation2], %s282
        %s284 = smul.u32 16, %s25
        %p285 = scmp.lt.s32.totalorder %s284, 15
        %s286 = scalar_select %p285, %s284, 15
        %s287 = smul.addr %s286, 8
        %s288 = scalar_lea.vmem %s0, %s287
        %s289 = smul.u32 16, %s25
        %s290 = smul.u32 16, %s25
        %p291 = scmp.lt.s32.totalorder %s290, 15
        %s292 = scalar_select %p291, %s290, 15
        %s293 = smul.addr %s292, 8
        %s294 = scalar_lea.vmem %s1, %s293
        %s295 = smul.u32 16, %s25
        %s296 = smul.u32 16, %s26
        %p297 = scmp.lt.s32.totalorder %s24, 1
        %s298 = scalar_select %p297, %s24, 1
        %p299 = scmp.lt.s32.totalorder %s296, 15
        %s300 = scalar_select %p299, %s296, 15
        %s301 = smul.addr %s298, 16
        %s302 = sadd.s32 %s300, %s301
        %s303 = smul.addr %s302, 8
        %s304 = scalar_lea.vmem %s4, %s303
        %s305 = smul.u32 16, %s26
        %s306 = smul.u32 16, %s25
        %s307 = smul.u32 4, %s26
        %v308 = vld [vmem:[%s288] sm:$0xff]
        %v309 = vld [vmem:[%s288 + $0x8] sm:$0xff]
        %v310 = vld [vmem:[%s288 + $0x10] sm:$0xff]
        %v311 = vld [vmem:[%s288 + $0x18] sm:$0xff]
        %v312 = vld [vmem:[%s288 + $0x20] sm:$0xff]
        %v313 = vld [vmem:[%s288 + $0x28] sm:$0xff]
        %v314 = vld [vmem:[%s288 + $0x30] sm:$0xff]
        %v315 = vld [vmem:[%s288 + $0x38] sm:$0xff]
        %v316 = vld [vmem:[%s288 + $0x40] sm:$0xff]
        %v317 = vld [vmem:[%s288 + $0x48] sm:$0xff]
        %v318 = vld [vmem:[%s288 + $0x50] sm:$0xff]
        %v319 = vld [vmem:[%s288 + $0x58] sm:$0xff]
        %v320 = vld [vmem:[%s288 + $0x60] sm:$0xff]
        %v321 = vld [vmem:[%s288 + $0x68] sm:$0xff]
        %v322 = vld [vmem:[%s288 + $0x70] sm:$0xff]
        %v323 = vld [vmem:[%s288 + $0x78] sm:$0xff]
        %v324 = vld [vmem:[%s294] sm:$0xff]
        %v325 = vld [vmem:[%s294 + $0x8] sm:$0xff]
        %v326 = vld [vmem:[%s294 + $0x10] sm:$0xff]
        %v327 = vld [vmem:[%s294 + $0x18] sm:$0xff]
        %v328 = vld [vmem:[%s294 + $0x20] sm:$0xff]
        %v329 = vld [vmem:[%s294 + $0x28] sm:$0xff]
        %v330 = vld [vmem:[%s294 + $0x30] sm:$0xff]
        %v331 = vld [vmem:[%s294 + $0x38] sm:$0xff]
        %v332 = vld [vmem:[%s294 + $0x40] sm:$0xff]
        %v333 = vld [vmem:[%s294 + $0x48] sm:$0xff]
        %v334 = vld [vmem:[%s294 + $0x50] sm:$0xff]
        %v335 = vld [vmem:[%s294 + $0x58] sm:$0xff]
        %v336 = vld [vmem:[%s294 + $0x60] sm:$0xff]
        %v337 = vld [vmem:[%s294 + $0x68] sm:$0xff]
        %v338 = vld [vmem:[%s294 + $0x70] sm:$0xff]
        %v339 = vld [vmem:[%s294 + $0x78] sm:$0xff]
        %v340 = vld [vmem:[%s304] sm:$0xff]
        %v341 = vld [vmem:[%s304 + $0x8] sm:$0xff]
        %v342 = vld [vmem:[%s304 + $0x10] sm:$0xff]
        %v343 = vld [vmem:[%s304 + $0x18] sm:$0xff]
        %345 = vset.pattern.permute.xlu0 0
        %346 = vperm.xlu0 %345, %v324
        %v347 = vpop.permute.xlu0 %346
        %350 = vset.pattern.permute.xlu0 0
        %351 = vperm.xlu0 %350, %v325
        %v352 = vpop.permute.xlu0 %351
        %355 = vset.pattern.permute.xlu0 0
        %356 = vperm.xlu0 %355, %v326
        %v357 = vpop.permute.xlu0 %356
        %360 = vset.pattern.permute.xlu0 0
        %361 = vperm.xlu0 %360, %v327
        %v362 = vpop.permute.xlu0 %361
        %365 = vset.pattern.permute.xlu0 0
        %366 = vperm.xlu0 %365, %v328
        %v367 = vpop.permute.xlu0 %366
        %370 = vset.pattern.permute.xlu0 0
        %371 = vperm.xlu0 %370, %v329
        %v372 = vpop.permute.xlu0 %371
        %375 = vset.pattern.permute.xlu0 0
        %376 = vperm.xlu0 %375, %v330
        %v377 = vpop.permute.xlu0 %376
        %380 = vset.pattern.permute.xlu0 0
        %381 = vperm.xlu0 %380, %v331
        %v382 = vpop.permute.xlu0 %381
        %385 = vset.pattern.permute.xlu0 0
        %386 = vperm.xlu0 %385, %v332
        %v387 = vpop.permute.xlu0 %386
        %390 = vset.pattern.permute.xlu0 0
        %391 = vperm.xlu0 %390, %v333
        %v392 = vpop.permute.xlu0 %391
        %395 = vset.pattern.permute.xlu0 0
        %396 = vperm.xlu0 %395, %v334
        %v397 = vpop.permute.xlu0 %396
        %400 = vset.pattern.permute.xlu0 0
        %401 = vperm.xlu0 %400, %v335
        %v402 = vpop.permute.xlu0 %401
        %405 = vset.pattern.permute.xlu0 0
        %406 = vperm.xlu0 %405, %v336
        %v407 = vpop.permute.xlu0 %406
        %410 = vset.pattern.permute.xlu0 0
        %411 = vperm.xlu0 %410, %v337
        %v412 = vpop.permute.xlu0 %411
        %415 = vset.pattern.permute.xlu0 0
        %416 = vperm.xlu0 %415, %v338
        %v417 = vpop.permute.xlu0 %416
        %420 = vset.pattern.permute.xlu0 0
        %421 = vperm.xlu0 %420, %v339
        %v422 = vpop.permute.xlu0 %421
        %vm424 = vcmask 261120
        %v426 = vsel %vm424, %v308, 0
        %v429 = vsel %vm424, %v309, 0
        %v432 = vsel %vm424, %v310, 0
        %v435 = vsel %vm424, %v311, 0
        %v438 = vsel %vm424, %v312, 0
        %v441 = vsel %vm424, %v313, 0
        %v444 = vsel %vm424, %v314, 0
        %v447 = vsel %vm424, %v315, 0
        %v450 = vsel %vm424, %v316, 0
        %v453 = vsel %vm424, %v317, 0
        %v456 = vsel %vm424, %v318, 0
        %v459 = vsel %vm424, %v319, 0
        %v462 = vsel %vm424, %v320, 0
        %v465 = vsel %vm424, %v321, 0
        %v468 = vsel %vm424, %v322, 0
        %v471 = vsel %vm424, %v323, 0
        %473 = vmatprep.subr.mxu0 0.0
        %474 = vmatpush1.msra.mxu0 %v340
        %475 = vmatprep.subr.mxu0 0.0
        %476 = vmatpush1.msra.mxu0 %v341
        %477 = vmatprep.subr.mxu0 0.0
        %478 = vmatpush1.msra.mxu0 %v342
        %479 = vmatprep.subr.mxu0 0.0
        %480 = vmatpush1.msra.mxu0 %v343
        %481 = vmatprep.subr.mxu0 0.0
        %482 = vmatpush1.msra.mxu0 0.0
        %483 = vmatprep.subr.mxu0 0.0
        %484 = vmatpush1.msra.mxu0 0.0
        %485 = vmatprep.subr.mxu0 0.0
        %486 = vmatpush1.msra.mxu0 0.0
        %487 = vmatprep.subr.mxu0 0.0
        %488 = vmatpush1.msra.mxu0 0.0
        %489 = vmatprep.subr.mxu0 0.0
        %490 = vmatpush1.msra.mxu0 0.0
        %491 = vmatprep.subr.mxu0 0.0
        %492 = vmatpush1.msra.mxu0 0.0
        %493 = vmatprep.subr.mxu0 0.0
        %494 = vmatpush1.msra.mxu0 0.0
        %495 = vmatprep.subr.mxu0 0.0
        %496 = vmatpush1.msra.mxu0 0.0
        %497 = vmatprep.subr.mxu0 0.0
        %498 = vmatpush1.msra.mxu0 0.0
        %499 = vmatprep.subr.mxu0 0.0
        %500 = vmatpush1.msra.mxu0 0.0
        %501 = vmatprep.subr.mxu0 0.0
        %502 = vmatpush1.msra.mxu0 0.0
        %503 = vmatprep.subr.mxu0 0.0
        %504 = vmatpush1.msra.mxu0 0.0
        %505 = vmatprep.subr.mxu0 0.0
        %506 = vmatpush1.msra.mxu0 0.0
        %507 = vmatprep.subr.mxu0 0.0
        %508 = vmatpush1.msra.mxu0 0.0
        %509 = vmatprep.subr.mxu0 0.0
        %510 = vmatpush1.msra.mxu0 0.0
        %511 = vmatprep.subr.mxu0 0.0
        %512 = vmatpush1.msra.mxu0 0.0
        %513 = vmatprep.subr.mxu0 0.0
        %514 = vmatpush1.msra.mxu0 0.0
        %515 = vmatprep.subr.mxu0 0.0
        %516 = vmatpush1.msra.mxu0 0.0
        %517 = vmatprep.subr.mxu0 0.0
        %518 = vmatpush1.msra.mxu0 0.0
        %519 = vmatprep.subr.mxu0 0.0
        %520 = vmatpush1.msra.mxu0 0.0
        %521 = vmatprep.subr.mxu0 0.0
        %522 = vmatpush1.msra.mxu0 0.0
        %523 = vmatprep.subr.mxu0 0.0
        %524 = vmatpush1.msra.mxu0 0.0
        %525 = vmatprep.subr.mxu0 0.0
        %526 = vmatpush1.msra.mxu0 0.0
        %527 = vmatprep.subr.mxu0 0.0
        %528 = vmatpush1.msra.mxu0 0.0
        %529 = vmatprep.subr.mxu0 0.0
        %530 = vmatpush1.msra.mxu0 0.0
        %531 = vmatprep.subr.mxu0 0.0
        %532 = vmatpush1.msra.mxu0 0.0
        %533 = vmatprep.subr.mxu0 0.0
        %534 = vmatpush1.msra.mxu0 0.0
        %535 = vmatprep.subr.mxu0 0.0
        %536 = vmatpush1.msra.mxu0 0.0
        %537 = vmatprep.mubr.f32.mxu0 0.0
        %538 = vmatmul.mubr.f32.gmra.mrb[0].mxu0 %v426
        %v539 = vpop.f32.mrb[0].mxu0
        %v540 = vadd.f32 %v347, %v539
        %v541 = vpop.f32.mrb[0].mxu0
        %542 = vmatprep.mubr.f32.mxu0 0.0
        %543 = vmatmul.mubr.f32.gmra.mrb[0].mxu0 %v429
        %v544 = vpop.f32.mrb[0].mxu0
        %v545 = vadd.f32 %v352, %v544
        %v546 = vpop.f32.mrb[0].mxu0
        %547 = vmatprep.mubr.f32.mxu0 0.0
        %548 = vmatmul.mubr.f32.gmra.mrb[0].mxu0 %v432
        %v549 = vpop.f32.mrb[0].mxu0
        %v550 = vadd.f32 %v357, %v549
        %v551 = vpop.f32.mrb[0].mxu0
        %552 = vmatprep.mubr.f32.mxu0 0.0
        %553 = vmatmul.mubr.f32.gmra.mrb[0].mxu0 %v435
        %v554 = vpop.f32.mrb[0].mxu0
        %v555 = vadd.f32 %v362, %v554
        %v556 = vpop.f32.mrb[0].mxu0
        %557 = vmatprep.mubr.f32.mxu0 0.0
        %558 = vmatmul.mubr.f32.gmra.mrb[0].mxu0 %v438
        %v559 = vpop.f32.mrb[0].mxu0
        %v560 = vadd.f32 %v367, %v559
        %v561 = vpop.f32.mrb[0].mxu0
        %562 = vmatprep.mubr.f32.mxu0 0.0
        %563 = vmatmul.mubr.f32.gmra.mrb[0].mxu0 %v441
        %v564 = vpop.f32.mrb[0].mxu0
        %v565 = vadd.f32 %v372, %v564
        %v566 = vpop.f32.mrb[0].mxu0
        %567 = vmatprep.mubr.f32.mxu0 0.0
        %568 = vmatmul.mubr.f32.gmra.mrb[0].mxu0 %v444
        %v569 = vpop.f32.mrb[0].mxu0
        %v570 = vadd.f32 %v377, %v569
        %v571 = vpop.f32.mrb[0].mxu0
        %572 = vmatprep.mubr.f32.mxu0 0.0
        %573 = vmatmul.mubr.f32.gmra.mrb[0].mxu0 %v447
        %v574 = vpop.f32.mrb[0].mxu0
        %v575 = vadd.f32 %v382, %v574
        %v576 = vpop.f32.mrb[0].mxu0
        %577 = vmatprep.mubr.f32.mxu0 0.0
        %578 = vmatmul.mubr.f32.gmra.mrb[0].mxu0 %v450
        %v579 = vpop.f32.mrb[0].mxu0
        %v580 = vadd.f32 %v387, %v579
        %v581 = vpop.f32.mrb[0].mxu0
        %582 = vmatprep.mubr.f32.mxu0 0.0
        %583 = vmatmul.mubr.f32.gmra.mrb[0].mxu0 %v453
        %v584 = vpop.f32.mrb[0].mxu0
        %v585 = vadd.f32 %v392, %v584
        %v586 = vpop.f32.mrb[0].mxu0
        %587 = vmatprep.mubr.f32.mxu0 0.0
        %588 = vmatmul.mubr.f32.gmra.mrb[0].mxu0 %v456
        %v589 = vpop.f32.mrb[0].mxu0
        %v590 = vadd.f32 %v397, %v589
        %v591 = vpop.f32.mrb[0].mxu0
        %592 = vmatprep.mubr.f32.mxu0 0.0
        %593 = vmatmul.mubr.f32.gmra.mrb[0].mxu0 %v459
        %v594 = vpop.f32.mrb[0].mxu0
        %v595 = vadd.f32 %v402, %v594
        %v596 = vpop.f32.mrb[0].mxu0
        %597 = vmatprep.mubr.f32.mxu0 0.0
        %598 = vmatmul.mubr.f32.gmra.mrb[0].mxu0 %v462
        %v599 = vpop.f32.mrb[0].mxu0
        %v600 = vadd.f32 %v407, %v599
        %v601 = vpop.f32.mrb[0].mxu0
        %602 = vmatprep.mubr.f32.mxu0 0.0
        %603 = vmatmul.mubr.f32.gmra.mrb[0].mxu0 %v465
        %v604 = vpop.f32.mrb[0].mxu0
        %v605 = vadd.f32 %v412, %v604
        %v606 = vpop.f32.mrb[0].mxu0
        %607 = vmatprep.mubr.f32.mxu0 0.0
        %608 = vmatmul.mubr.f32.gmra.mrb[0].mxu0 %v468
        %v609 = vpop.f32.mrb[0].mxu0
        %v610 = vadd.f32 %v417, %v609
        %v611 = vpop.f32.mrb[0].mxu0
        %612 = vmatprep.mubr.f32.mxu0 0.0
        %613 = vmatmul.mubr.f32.gmra.mrb[0].mxu0 %v471
        %v614 = vpop.f32.mrb[0].mxu0
        %v615 = vadd.f32 %v422, %v614
        %v616 = vpop.f32.mrb[0].mxu0
        %617 = vdwg.mxu0
        %vm618 = vcmp.gt.f32.partialorder %v540, 0.0
        %vm619 = vcmp.gt.f32.partialorder %v545, 0.0
        %vm620 = vcmp.gt.f32.partialorder %v550, 0.0
        %vm621 = vcmp.gt.f32.partialorder %v555, 0.0
        %vm622 = vcmp.gt.f32.partialorder %v560, 0.0
        %vm623 = vcmp.gt.f32.partialorder %v565, 0.0
        %vm624 = vcmp.gt.f32.partialorder %v570, 0.0
        %vm625 = vcmp.gt.f32.partialorder %v575, 0.0
        %vm626 = vcmp.gt.f32.partialorder %v580, 0.0
        %vm627 = vcmp.gt.f32.partialorder %v585, 0.0
        %vm628 = vcmp.gt.f32.partialorder %v590, 0.0
        %vm629 = vcmp.gt.f32.partialorder %v595, 0.0
        %vm630 = vcmp.gt.f32.partialorder %v600, 0.0
        %vm631 = vcmp.gt.f32.partialorder %v605, 0.0
        %vm632 = vcmp.gt.f32.partialorder %v610, 0.0
        %vm633 = vcmp.gt.f32.partialorder %v615, 0.0
        %v634 = vmin.f32 %v540, 0.0
        %v635 = vmin.f32 %v545, 0.0
        %v636 = vmin.f32 %v550, 0.0
        %v637 = vmin.f32 %v555, 0.0
        %v638 = vmin.f32 %v560, 0.0
        %v639 = vmin.f32 %v565, 0.0
        %v640 = vmin.f32 %v570, 0.0
        %v641 = vmin.f32 %v575, 0.0
        %v642 = vmin.f32 %v580, 0.0
        %v643 = vmin.f32 %v585, 0.0
        %v644 = vmin.f32 %v590, 0.0
        %v645 = vmin.f32 %v595, 0.0
        %v646 = vmin.f32 %v600, 0.0
        %v647 = vmin.f32 %v605, 0.0
        %v648 = vmin.f32 %v610, 0.0
        %v649 = vmin.f32 %v615, 0.0
        %v650 = vmul.f32 %v634, 1.442695
        %v651 = vpow.pop %v650
        %v652 = vmul.f32 %v635, 1.442695
        %v653 = vpow.pop %v652
        %v654 = vmul.f32 %v636, 1.442695
        %v655 = vpow.pop %v654
        %v656 = vmul.f32 %v637, 1.442695
        %v657 = vpow.pop %v656
        %v658 = vmul.f32 %v638, 1.442695
        %v659 = vpow.pop %v658
        %v660 = vmul.f32 %v639, 1.442695
        %v661 = vpow.pop %v660
        %v662 = vmul.f32 %v640, 1.442695
        %v663 = vpow.pop %v662
        %v664 = vmul.f32 %v641, 1.442695
        %v665 = vpow.pop %v664
        %v666 = vmul.f32 %v642, 1.442695
        %v667 = vpow.pop %v666
        %v668 = vmul.f32 %v643, 1.442695
        %v669 = vpow.pop %v668
        %v670 = vmul.f32 %v644, 1.442695
        %v671 = vpow.pop %v670
        %v672 = vmul.f32 %v645, 1.442695
        %v673 = vpow.pop %v672
        %v674 = vmul.f32 %v646, 1.442695
        %v675 = vpow.pop %v674
        %v676 = vmul.f32 %v647, 1.442695
        %v677 = vpow.pop %v676
        %v678 = vmul.f32 %v648, 1.442695
        %v679 = vpow.pop %v678
        %v680 = vmul.f32 %v649, 1.442695
        %v681 = vpow.pop %v680
        %v682 = vsub.f32 %v651, 1.0
        %v683 = vsub.f32 %v653, 1.0
        %v684 = vsub.f32 %v655, 1.0
        %v685 = vsub.f32 %v657, 1.0
        %v686 = vsub.f32 %v659, 1.0
        %v687 = vsub.f32 %v661, 1.0
        %v688 = vsub.f32 %v663, 1.0
        %v689 = vsub.f32 %v665, 1.0
        %v690 = vsub.f32 %v667, 1.0
        %v691 = vsub.f32 %v669, 1.0
        %v692 = vsub.f32 %v671, 1.0
        %v693 = vsub.f32 %v673, 1.0
        %v694 = vsub.f32 %v675, 1.0
        %v695 = vsub.f32 %v677, 1.0
        %v696 = vsub.f32 %v679, 1.0
        %v697 = vsub.f32 %v681, 1.0
        %v698 = vsel %vm618, %v540, %v682
        %v699 = vsel %vm619, %v545, %v683
        %v700 = vsel %vm620, %v550, %v684
        %v701 = vsel %vm621, %v555, %v685
        %v702 = vsel %vm622, %v560, %v686
        %v703 = vsel %vm623, %v565, %v687
        %v704 = vsel %vm624, %v570, %v688
        %v705 = vsel %vm625, %v575, %v689
        %v706 = vsel %vm626, %v580, %v690
        %v707 = vsel %vm627, %v585, %v691
        %v708 = vsel %vm628, %v590, %v692
        %v709 = vsel %vm629, %v595, %v693
        %v710 = vsel %vm630, %v600, %v694
        %v711 = vsel %vm631, %v605, %v695
        %v712 = vsel %vm632, %v610, %v696
        %v713 = vsel %vm633, %v615, %v697
        %714 = vst.msk [vmem:[%s283] sm:$0xff] %vm424, %v698
        %715 = vst.msk [vmem:[%s283 + $0x20] sm:$0xff] %vm424, %v699
        %716 = vst.msk [vmem:[%s283 + $0x40] sm:$0xff] %vm424, %v700
        %717 = vst.msk [vmem:[%s283 + $0x60] sm:$0xff] %vm424, %v701
        %718 = vst.msk [vmem:[%s283 + $0x80] sm:$0xff] %vm424, %v702
        %719 = vst.msk [vmem:[%s283 + $0xa0] sm:$0xff] %vm424, %v703
        %720 = vst.msk [vmem:[%s283 + $0xc0] sm:$0xff] %vm424, %v704
        %721 = vst.msk [vmem:[%s283 + $0xe0] sm:$0xff] %vm424, %v705
        %722 = vst.msk [vmem:[%s283 + $0x100] sm:$0xff] %vm424, %v706
        %723 = vst.msk [vmem:[%s283 + $0x120] sm:$0xff] %vm424, %v707
        %724 = vst.msk [vmem:[%s283 + $0x140] sm:$0xff] %vm424, %v708
        %725 = vst.msk [vmem:[%s283 + $0x160] sm:$0xff] %vm424, %v709
        %726 = vst.msk [vmem:[%s283 + $0x180] sm:$0xff] %vm424, %v710
        %727 = vst.msk [vmem:[%s283 + $0x1a0] sm:$0xff] %vm424, %v711
        %728 = vst.msk [vmem:[%s283 + $0x1c0] sm:$0xff] %vm424, %v712
        %729 = vst.msk [vmem:[%s283 + $0x1e0] sm:$0xff] %vm424, %v713
        %v730 = vld [vmem:[%s304 + $0x20] sm:$0xff]
        %v731 = vld [vmem:[%s304 + $0x28] sm:$0xff]
        %v732 = vld [vmem:[%s304 + $0x30] sm:$0xff]
        %v733 = vld [vmem:[%s304 + $0x38] sm:$0xff]
        %734 = vmatprep.subr.mxu0 0.0
        %735 = vmatpush1.msra.mxu0 %v730
        %736 = vmatprep.subr.mxu0 0.0
        %737 = vmatpush1.msra.mxu0 %v731
        %738 = vmatprep.subr.mxu0 0.0
        %739 = vmatpush1.msra.mxu0 %v732
        %740 = vmatprep.subr.mxu0 0.0
        %741 = vmatpush1.msra.mxu0 %v733
        %742 = vmatprep.subr.mxu0 0.0
        %743 = vmatpush1.msra.mxu0 0.0
        %744 = vmatprep.subr.mxu0 0.0
        %745 = vmatpush1.msra.mxu0 0.0
        %746 = vmatprep.subr.mxu0 0.0
        %747 = vmatpush1.msra.mxu0 0.0
        %748 = vmatprep.subr.mxu0 0.0
        %749 = vmatpush1.msra.mxu0 0.0
        %750 = vmatprep.subr.mxu0 0.0
        %751 = vmatpush1.msra.mxu0 0.0
        %752 = vmatprep.subr.mxu0 0.0
        %753 = vmatpush1.msra.mxu0 0.0
        %754 = vmatprep.subr.mxu0 0.0
        %755 = vmatpush1.msra.mxu0 0.0
        %756 = vmatprep.subr.mxu0 0.0
        %757 = vmatpush1.msra.mxu0 0.0
        %758 = vmatprep.subr.mxu0 0.0
        %759 = vmatpush1.msra.mxu0 0.0
        %760 = vmatprep.subr.mxu0 0.0
        %761 = vmatpush1.msra.mxu0 0.0
        %762 = vmatprep.subr.mxu0 0.0
        %763 = vmatpush1.msra.mxu0 0.0
        %764 = vmatprep.subr.mxu0 0.0
        %765 = vmatpush1.msra.mxu0 0.0
        %766 = vmatprep.subr.mxu0 0.0
        %767 = vmatpush1.msra.mxu0 0.0
        %768 = vmatprep.subr.mxu0 0.0
        %769 = vmatpush1.msra.mxu0 0.0
        %770 = vmatprep.subr.mxu0 0.0
        %771 = vmatpush1.msra.mxu0 0.0
        %772 = vmatprep.subr.mxu0 0.0
        %773 = vmatpush1.msra.mxu0 0.0
        %774 = vmatprep.subr.mxu0 0.0
        %775 = vmatpush1.msra.mxu0 0.0
        %776 = vmatprep.subr.mxu0 0.0
        %777 = vmatpush1.msra.mxu0 0.0
        %778 = vmatprep.subr.mxu0 0.0
        %779 = vmatpush1.msra.mxu0 0.0
        %780 = vmatprep.subr.mxu0 0.0
        %781 = vmatpush1.msra.mxu0 0.0
        %782 = vmatprep.subr.mxu0 0.0
        %783 = vmatpush1.msra.mxu0 0.0
        %784 = vmatprep.subr.mxu0 0.0
        %785 = vmatpush1.msra.mxu0 0.0
        %786 = vmatprep.subr.mxu0 0.0
        %787 = vmatpush1.msra.mxu0 0.0
        %788 = vmatprep.subr.mxu0 0.0
        %789 = vmatpush1.msra.mxu0 0.0
        %790 = vmatprep.subr.mxu0 0.0
        %791 = vmatpush1.msra.mxu0 0.0
        %792 = vmatprep.subr.mxu0 0.0
        %793 = vmatpush1.msra.mxu0 0.0
        %794 = vmatprep.subr.mxu0 0.0
        %795 = vmatpush1.msra.mxu0 0.0
        %796 = vmatprep.subr.mxu0 0.0
        %797 = vmatpush1.msra.mxu0 0.0
        %798 = vmatprep.mubr.f32.mxu0 0.0
        %799 = vmatmul.mubr.f32.gmra.mrb[0].mxu0 %v426
        %v800 = vpop.f32.mrb[0].mxu0
        %v801 = vadd.f32 %v347, %v800
        %v802 = vpop.f32.mrb[0].mxu0
        %803 = vmatprep.mubr.f32.mxu0 0.0
        %804 = vmatmul.mubr.f32.gmra.mrb[0].mxu0 %v429
        %v805 = vpop.f32.mrb[0].mxu0
        %v806 = vadd.f32 %v352, %v805
        %v807 = vpop.f32.mrb[0].mxu0
        %808 = vmatprep.mubr.f32.mxu0 0.0
        %809 = vmatmul.mubr.f32.gmra.mrb[0].mxu0 %v432
        %v810 = vpop.f32.mrb[0].mxu0
        %v811 = vadd.f32 %v357, %v810
        %v812 = vpop.f32.mrb[0].mxu0
        %813 = vmatprep.mubr.f32.mxu0 0.0
        %814 = vmatmul.mubr.f32.gmra.mrb[0].mxu0 %v435
        %v815 = vpop.f32.mrb[0].mxu0
        %v816 = vadd.f32 %v362, %v815
        %v817 = vpop.f32.mrb[0].mxu0
        %818 = vmatprep.mubr.f32.mxu0 0.0
        %819 = vmatmul.mubr.f32.gmra.mrb[0].mxu0 %v438
        %v820 = vpop.f32.mrb[0].mxu0
        %v821 = vadd.f32 %v367, %v820
        %v822 = vpop.f32.mrb[0].mxu0
        %823 = vmatprep.mubr.f32.mxu0 0.0
        %824 = vmatmul.mubr.f32.gmra.mrb[0].mxu0 %v441
        %v825 = vpop.f32.mrb[0].mxu0
        %v826 = vadd.f32 %v372, %v825
        %v827 = vpop.f32.mrb[0].mxu0
        %828 = vmatprep.mubr.f32.mxu0 0.0
        %829 = vmatmul.mubr.f32.gmra.mrb[0].mxu0 %v444
        %v830 = vpop.f32.mrb[0].mxu0
        %v831 = vadd.f32 %v377, %v830
        %v832 = vpop.f32.mrb[0].mxu0
        %833 = vmatprep.mubr.f32.mxu0 0.0
        %834 = vmatmul.mubr.f32.gmra.mrb[0].mxu0 %v447
        %v835 = vpop.f32.mrb[0].mxu0
        %v836 = vadd.f32 %v382, %v835
        %v837 = vpop.f32.mrb[0].mxu0
        %838 = vmatprep.mubr.f32.mxu0 0.0
        %839 = vmatmul.mubr.f32.gmra.mrb[0].mxu0 %v450
        %v840 = vpop.f32.mrb[0].mxu0
        %v841 = vadd.f32 %v387, %v840
        %v842 = vpop.f32.mrb[0].mxu0
        %843 = vmatprep.mubr.f32.mxu0 0.0
        %844 = vmatmul.mubr.f32.gmra.mrb[0].mxu0 %v453
        %v845 = vpop.f32.mrb[0].mxu0
        %v846 = vadd.f32 %v392, %v845
        %v847 = vpop.f32.mrb[0].mxu0
        %848 = vmatprep.mubr.f32.mxu0 0.0
        %849 = vmatmul.mubr.f32.gmra.mrb[0].mxu0 %v456
        %v850 = vpop.f32.mrb[0].mxu0
        %v851 = vadd.f32 %v397, %v850
        %v852 = vpop.f32.mrb[0].mxu0
        %853 = vmatprep.mubr.f32.mxu0 0.0
        %854 = vmatmul.mubr.f32.gmra.mrb[0].mxu0 %v459
        %v855 = vpop.f32.mrb[0].mxu0
        %v856 = vadd.f32 %v402, %v855
        %v857 = vpop.f32.mrb[0].mxu0
        %858 = vmatprep.mubr.f32.mxu0 0.0
        %859 = vmatmul.mubr.f32.gmra.mrb[0].mxu0 %v462
        %v860 = vpop.f32.mrb[0].mxu0
        %v861 = vadd.f32 %v407, %v860
        %v862 = vpop.f32.mrb[0].mxu0
        %863 = vmatprep.mubr.f32.mxu0 0.0
        %864 = vmatmul.mubr.f32.gmra.mrb[0].mxu0 %v465
        %v865 = vpop.f32.mrb[0].mxu0
        %v866 = vadd.f32 %v412, %v865
        %v867 = vpop.f32.mrb[0].mxu0
        %868 = vmatprep.mubr.f32.mxu0 0.0
        %869 = vmatmul.mubr.f32.gmra.mrb[0].mxu0 %v468
        %v870 = vpop.f32.mrb[0].mxu0
        %v871 = vadd.f32 %v417, %v870
        %v872 = vpop.f32.mrb[0].mxu0
        %873 = vmatprep.mubr.f32.mxu0 0.0
        %874 = vmatmul.mubr.f32.gmra.mrb[0].mxu0 %v471
        %v875 = vpop.f32.mrb[0].mxu0
        %v876 = vadd.f32 %v422, %v875
        %v877 = vpop.f32.mrb[0].mxu0
        %878 = vdwg.mxu0
        %vm879 = vcmp.gt.f32.partialorder %v801, 0.0
        %vm880 = vcmp.gt.f32.partialorder %v806, 0.0
        %vm881 = vcmp.gt.f32.partialorder %v811, 0.0
        %vm882 = vcmp.gt.f32.partialorder %v816, 0.0
        %vm883 = vcmp.gt.f32.partialorder %v821, 0.0
        %vm884 = vcmp.gt.f32.partialorder %v826, 0.0
        %vm885 = vcmp.gt.f32.partialorder %v831, 0.0
        %vm886 = vcmp.gt.f32.partialorder %v836, 0.0
        %vm887 = vcmp.gt.f32.partialorder %v841, 0.0
        %vm888 = vcmp.gt.f32.partialorder %v846, 0.0
        %vm889 = vcmp.gt.f32.partialorder %v851, 0.0
        %vm890 = vcmp.gt.f32.partialorder %v856, 0.0
        %vm891 = vcmp.gt.f32.partialorder %v861, 0.0
        %vm892 = vcmp.gt.f32.partialorder %v866, 0.0
        %vm893 = vcmp.gt.f32.partialorder %v871, 0.0
        %vm894 = vcmp.gt.f32.partialorder %v876, 0.0
        %v895 = vmin.f32 %v801, 0.0
        %v896 = vmin.f32 %v806, 0.0
        %v897 = vmin.f32 %v811, 0.0
        %v898 = vmin.f32 %v816, 0.0
        %v899 = vmin.f32 %v821, 0.0
        %v900 = vmin.f32 %v826, 0.0
        %v901 = vmin.f32 %v831, 0.0
        %v902 = vmin.f32 %v836, 0.0
        %v903 = vmin.f32 %v841, 0.0
        %v904 = vmin.f32 %v846, 0.0
        %v905 = vmin.f32 %v851, 0.0
        %v906 = vmin.f32 %v856, 0.0
        %v907 = vmin.f32 %v861, 0.0
        %v908 = vmin.f32 %v866, 0.0
        %v909 = vmin.f32 %v871, 0.0
        %v910 = vmin.f32 %v876, 0.0
        %v911 = vmul.f32 %v895, 1.442695
        %v912 = vpow.pop %v911
        %v913 = vmul.f32 %v896, 1.442695
        %v914 = vpow.pop %v913
        %v915 = vmul.f32 %v897, 1.442695
        %v916 = vpow.pop %v915
        %v917 = vmul.f32 %v898, 1.442695
        %v918 = vpow.pop %v917
        %v919 = vmul.f32 %v899, 1.442695
        %v920 = vpow.pop %v919
        %v921 = vmul.f32 %v900, 1.442695
        %v922 = vpow.pop %v921
        %v923 = vmul.f32 %v901, 1.442695
        %v924 = vpow.pop %v923
        %v925 = vmul.f32 %v902, 1.442695
        %v926 = vpow.pop %v925
        %v927 = vmul.f32 %v903, 1.442695
        %v928 = vpow.pop %v927
        %v929 = vmul.f32 %v904, 1.442695
        %v930 = vpow.pop %v929
        %v931 = vmul.f32 %v905, 1.442695
        %v932 = vpow.pop %v931
        %v933 = vmul.f32 %v906, 1.442695
        %v934 = vpow.pop %v933
        %v935 = vmul.f32 %v907, 1.442695
        %v936 = vpow.pop %v935
        %v937 = vmul.f32 %v908, 1.442695
        %v938 = vpow.pop %v937
        %v939 = vmul.f32 %v909, 1.442695
        %v940 = vpow.pop %v939
        %v941 = vmul.f32 %v910, 1.442695
        %v942 = vpow.pop %v941
        %v943 = vsub.f32 %v912, 1.0
        %v944 = vsub.f32 %v914, 1.0
        %v945 = vsub.f32 %v916, 1.0
        %v946 = vsub.f32 %v918, 1.0
        %v947 = vsub.f32 %v920, 1.0
        %v948 = vsub.f32 %v922, 1.0
        %v949 = vsub.f32 %v924, 1.0
        %v950 = vsub.f32 %v926, 1.0
        %v951 = vsub.f32 %v928, 1.0
        %v952 = vsub.f32 %v930, 1.0
        %v953 = vsub.f32 %v932, 1.0
        %v954 = vsub.f32 %v934, 1.0
        %v955 = vsub.f32 %v936, 1.0
        %v956 = vsub.f32 %v938, 1.0
        %v957 = vsub.f32 %v940, 1.0
        %v958 = vsub.f32 %v942, 1.0
        %v959 = vsel %vm879, %v801, %v943
        %v960 = vsel %vm880, %v806, %v944
        %v961 = vsel %vm881, %v811, %v945
        %v962 = vsel %vm882, %v816, %v946
        %v963 = vsel %vm883, %v821, %v947
        %v964 = vsel %vm884, %v826, %v948
        %v965 = vsel %vm885, %v831, %v949
        %v966 = vsel %vm886, %v836, %v950
        %v967 = vsel %vm887, %v841, %v951
        %v968 = vsel %vm888, %v846, %v952
        %v969 = vsel %vm889, %v851, %v953
        %v970 = vsel %vm890, %v856, %v954
        %v971 = vsel %vm891, %v861, %v955
        %v972 = vsel %vm892, %v866, %v956
        %v973 = vsel %vm893, %v871, %v957
        %v974 = vsel %vm894, %v876, %v958
        %975 = vst.msk [vmem:[%s283 + $0x8] sm:$0xff] %vm424, %v959
        %976 = vst.msk [vmem:[%s283 + $0x28] sm:$0xff] %vm424, %v960
        %977 = vst.msk [vmem:[%s283 + $0x48] sm:$0xff] %vm424, %v961
        %978 = vst.msk [vmem:[%s283 + $0x68] sm:$0xff] %vm424, %v962
        %979 = vst.msk [vmem:[%s283 + $0x88] sm:$0xff] %vm424, %v963
        %980 = vst.msk [vmem:[%s283 + $0xa8] sm:$0xff] %vm424, %v964
        %981 = vst.msk [vmem:[%s283 + $0xc8] sm:$0xff] %vm424, %v965
        %982 = vst.msk [vmem:[%s283 + $0xe8] sm:$0xff] %vm424, %v966
        %983 = vst.msk [vmem:[%s283 + $0x108] sm:$0xff] %vm424, %v967
        %984 = vst.msk [vmem:[%s283 + $0x128] sm:$0xff] %vm424, %v968
        %985 = vst.msk [vmem:[%s283 + $0x148] sm:$0xff] %vm424, %v969
        %986 = vst.msk [vmem:[%s283 + $0x168] sm:$0xff] %vm424, %v970
        %987 = vst.msk [vmem:[%s283 + $0x188] sm:$0xff] %vm424, %v971
        %988 = vst.msk [vmem:[%s283 + $0x1a8] sm:$0xff] %vm424, %v972
        %989 = vst.msk [vmem:[%s283 + $0x1c8] sm:$0xff] %vm424, %v973
        %990 = vst.msk [vmem:[%s283 + $0x1e8] sm:$0xff] %vm424, %v974
        %v991 = vld [vmem:[%s304 + $0x40] sm:$0xff]
        %v992 = vld [vmem:[%s304 + $0x48] sm:$0xff]
        %v993 = vld [vmem:[%s304 + $0x50] sm:$0xff]
        %v994 = vld [vmem:[%s304 + $0x58] sm:$0xff]
        %995 = vmatprep.subr.mxu0 0.0
        %996 = vmatpush1.msra.mxu0 %v991
        %997 = vmatprep.subr.mxu0 0.0
        %998 = vmatpush1.msra.mxu0 %v992
        %999 = vmatprep.subr.mxu0 0.0
        %1000 = vmatpush1.msra.mxu0 %v993
        %1001 = vmatprep.subr.mxu0 0.0
        %1002 = vmatpush1.msra.mxu0 %v994
        %1003 = vmatprep.subr.mxu0 0.0
        %1004 = vmatpush1.msra.mxu0 0.0
        %1005 = vmatprep.subr.mxu0 0.0
        %1006 = vmatpush1.msra.mxu0 0.0
        %1007 = vmatprep.subr.mxu0 0.0
        %1008 = vmatpush1.msra.mxu0 0.0
        %1009 = vmatprep.subr.mxu0 0.0
        %1010 = vmatpush1.msra.mxu0 0.0
        %1011 = vmatprep.subr.mxu0 0.0
        %1012 = vmatpush1.msra.mxu0 0.0
        %1013 = vmatprep.subr.mxu0 0.0
        %1014 = vmatpush1.msra.mxu0 0.0
        %1015 = vmatprep.subr.mxu0 0.0
        %1016 = vmatpush1.msra.mxu0 0.0
        %1017 = vmatprep.subr.mxu0 0.0
        %1018 = vmatpush1.msra.mxu0 0.0
        %1019 = vmatprep.subr.mxu0 0.0
        %1020 = vmatpush1.msra.mxu0 0.0
        %1021 = vmatprep.subr.mxu0 0.0
        %1022 = vmatpush1.msra.mxu0 0.0
        %1023 = vmatprep.subr.mxu0 0.0
        %1024 = vmatpush1.msra.mxu0 0.0
        %1025 = vmatprep.subr.mxu0 0.0
        %1026 = vmatpush1.msra.mxu0 0.0
        %1027 = vmatprep.subr.mxu0 0.0
        %1028 = vmatpush1.msra.mxu0 0.0
        %1029 = vmatprep.subr.mxu0 0.0
        %1030 = vmatpush1.msra.mxu0 0.0
        %1031 = vmatprep.subr.mxu0 0.0
        %1032 = vmatpush1.msra.mxu0 0.0
        %1033 = vmatprep.subr.mxu0 0.0
        %1034 = vmatpush1.msra.mxu0 0.0
        %1035 = vmatprep.subr.mxu0 0.0
        %1036 = vmatpush1.msra.mxu0 0.0
        %1037 = vmatprep.subr.mxu0 0.0
        %1038 = vmatpush1.msra.mxu0 0.0
        %1039 = vmatprep.subr.mxu0 0.0
        %1040 = vmatpush1.msra.mxu0 0.0
        %1041 = vmatprep.subr.mxu0 0.0
        %1042 = vmatpush1.msra.mxu0 0.0
        %1043 = vmatprep.subr.mxu0 0.0
        %1044 = vmatpush1.msra.mxu0 0.0
        %1045 = vmatprep.subr.mxu0 0.0
        %1046 = vmatpush1.msra.mxu0 0.0
        %1047 = vmatprep.subr.mxu0 0.0
        %1048 = vmatpush1.msra.mxu0 0.0
        %1049 = vmatprep.subr.mxu0 0.0
        %1050 = vmatpush1.msra.mxu0 0.0
        %1051 = vmatprep.subr.mxu0 0.0
        %1052 = vmatpush1.msra.mxu0 0.0
        %1053 = vmatprep.subr.mxu0 0.0
        %1054 = vmatpush1.msra.mxu0 0.0
        %1055 = vmatprep.subr.mxu0 0.0
        %1056 = vmatpush1.msra.mxu0 0.0
        %1057 = vmatprep.subr.mxu0 0.0
        %1058 = vmatpush1.msra.mxu0 0.0
        %1059 = vmatprep.mubr.f32.mxu0 0.0
        %1060 = vmatmul.mubr.f32.gmra.mrb[0].mxu0 %v426
        %v1061 = vpop.f32.mrb[0].mxu0
        %v1062 = vadd.f32 %v347, %v1061
        %v1063 = vpop.f32.mrb[0].mxu0
        %1064 = vmatprep.mubr.f32.mxu0 0.0
        %1065 = vmatmul.mubr.f32.gmra.mrb[0].mxu0 %v429
        %v1066 = vpop.f32.mrb[0].mxu0
        %v1067 = vadd.f32 %v352, %v1066
        %v1068 = vpop.f32.mrb[0].mxu0
        %1069 = vmatprep.mubr.f32.mxu0 0.0
        %1070 = vmatmul.mubr.f32.gmra.mrb[0].mxu0 %v432
        %v1071 = vpop.f32.mrb[0].mxu0
        %v1072 = vadd.f32 %v357, %v1071
        %v1073 = vpop.f32.mrb[0].mxu0
        %1074 = vmatprep.mubr.f32.mxu0 0.0
        %1075 = vmatmul.mubr.f32.gmra.mrb[0].mxu0 %v435
        %v1076 = vpop.f32.mrb[0].mxu0
        %v1077 = vadd.f32 %v362, %v1076
        %v1078 = vpop.f32.mrb[0].mxu0
        %1079 = vmatprep.mubr.f32.mxu0 0.0
        %1080 = vmatmul.mubr.f32.gmra.mrb[0].mxu0 %v438
        %v1081 = vpop.f32.mrb[0].mxu0
        %v1082 = vadd.f32 %v367, %v1081
        %v1083 = vpop.f32.mrb[0].mxu0
        %1084 = vmatprep.mubr.f32.mxu0 0.0
        %1085 = vmatmul.mubr.f32.gmra.mrb[0].mxu0 %v441
        %v1086 = vpop.f32.mrb[0].mxu0
        %v1087 = vadd.f32 %v372, %v1086
        %v1088 = vpop.f32.mrb[0].mxu0
        %1089 = vmatprep.mubr.f32.mxu0 0.0
        %1090 = vmatmul.mubr.f32.gmra.mrb[0].mxu0 %v444
        %v1091 = vpop.f32.mrb[0].mxu0
        %v1092 = vadd.f32 %v377, %v1091
        %v1093 = vpop.f32.mrb[0].mxu0
        %1094 = vmatprep.mubr.f32.mxu0 0.0
        %1095 = vmatmul.mubr.f32.gmra.mrb[0].mxu0 %v447
        %v1096 = vpop.f32.mrb[0].mxu0
        %v1097 = vadd.f32 %v382, %v1096
        %v1098 = vpop.f32.mrb[0].mxu0
        %1099 = vmatprep.mubr.f32.mxu0 0.0
        %1100 = vmatmul.mubr.f32.gmra.mrb[0].mxu0 %v450
        %v1101 = vpop.f32.mrb[0].mxu0
        %v1102 = vadd.f32 %v387, %v1101
        %v1103 = vpop.f32.mrb[0].mxu0
        %1104 = vmatprep.mubr.f32.mxu0 0.0
        %1105 = vmatmul.mubr.f32.gmra.mrb[0].mxu0 %v453
        %v1106 = vpop.f32.mrb[0].mxu0
        %v1107 = vadd.f32 %v392, %v1106
        %v1108 = vpop.f32.mrb[0].mxu0
        %1109 = vmatprep.mubr.f32.mxu0 0.0
        %1110 = vmatmul.mubr.f32.gmra.mrb[0].mxu0 %v456
        %v1111 = vpop.f32.mrb[0].mxu0
        %v1112 = vadd.f32 %v397, %v1111
        %v1113 = vpop.f32.mrb[0].mxu0
        %1114 = vmatprep.mubr.f32.mxu0 0.0
        %1115 = vmatmul.mubr.f32.gmra.mrb[0].mxu0 %v459
        %v1116 = vpop.f32.mrb[0].mxu0
        %v1117 = vadd.f32 %v402, %v1116
        %v1118 = vpop.f32.mrb[0].mxu0
        %1119 = vmatprep.mubr.f32.mxu0 0.0
        %1120 = vmatmul.mubr.f32.gmra.mrb[0].mxu0 %v462
        %v1121 = vpop.f32.mrb[0].mxu0
        %v1122 = vadd.f32 %v407, %v1121
        %v1123 = vpop.f32.mrb[0].mxu0
        %1124 = vmatprep.mubr.f32.mxu0 0.0
        %1125 = vmatmul.mubr.f32.gmra.mrb[0].mxu0 %v465
        %v1126 = vpop.f32.mrb[0].mxu0
        %v1127 = vadd.f32 %v412, %v1126
        %v1128 = vpop.f32.mrb[0].mxu0
        %1129 = vmatprep.mubr.f32.mxu0 0.0
        %1130 = vmatmul.mubr.f32.gmra.mrb[0].mxu0 %v468
        %v1131 = vpop.f32.mrb[0].mxu0
        %v1132 = vadd.f32 %v417, %v1131
        %v1133 = vpop.f32.mrb[0].mxu0
        %1134 = vmatprep.mubr.f32.mxu0 0.0
        %1135 = vmatmul.mubr.f32.gmra.mrb[0].mxu0 %v471
        %v1136 = vpop.f32.mrb[0].mxu0
        %v1137 = vadd.f32 %v422, %v1136
        %v1138 = vpop.f32.mrb[0].mxu0
        %1139 = vdwg.mxu0
        %vm1140 = vcmp.gt.f32.partialorder %v1062, 0.0
        %vm1141 = vcmp.gt.f32.partialorder %v1067, 0.0
        %vm1142 = vcmp.gt.f32.partialorder %v1072, 0.0
        %vm1143 = vcmp.gt.f32.partialorder %v1077, 0.0
        %vm1144 = vcmp.gt.f32.partialorder %v1082, 0.0
        %vm1145 = vcmp.gt.f32.partialorder %v1087, 0.0
        %vm1146 = vcmp.gt.f32.partialorder %v1092, 0.0
        %vm1147 = vcmp.gt.f32.partialorder %v1097, 0.0
        %vm1148 = vcmp.gt.f32.partialorder %v1102, 0.0
        %vm1149 = vcmp.gt.f32.partialorder %v1107, 0.0
        %vm1150 = vcmp.gt.f32.partialorder %v1112, 0.0
        %vm1151 = vcmp.gt.f32.partialorder %v1117, 0.0
        %vm1152 = vcmp.gt.f32.partialorder %v1122, 0.0
        %vm1153 = vcmp.gt.f32.partialorder %v1127, 0.0
        %vm1154 = vcmp.gt.f32.partialorder %v1132, 0.0
        %vm1155 = vcmp.gt.f32.partialorder %v1137, 0.0
        %v1156 = vmin.f32 %v1062, 0.0
        %v1157 = vmin.f32 %v1067, 0.0
        %v1158 = vmin.f32 %v1072, 0.0
        %v1159 = vmin.f32 %v1077, 0.0
        %v1160 = vmin.f32 %v1082, 0.0
        %v1161 = vmin.f32 %v1087, 0.0
        %v1162 = vmin.f32 %v1092, 0.0
        %v1163 = vmin.f32 %v1097, 0.0
        %v1164 = vmin.f32 %v1102, 0.0
        %v1165 = vmin.f32 %v1107, 0.0
        %v1166 = vmin.f32 %v1112, 0.0
        %v1167 = vmin.f32 %v1117, 0.0
        %v1168 = vmin.f32 %v1122, 0.0
        %v1169 = vmin.f32 %v1127, 0.0
        %v1170 = vmin.f32 %v1132, 0.0
        %v1171 = vmin.f32 %v1137, 0.0
        %v1172 = vmul.f32 %v1156, 1.442695
        %v1173 = vpow.pop %v1172
        %v1174 = vmul.f32 %v1157, 1.442695
        %v1175 = vpow.pop %v1174
        %v1176 = vmul.f32 %v1158, 1.442695
        %v1177 = vpow.pop %v1176
        %v1178 = vmul.f32 %v1159, 1.442695
        %v1179 = vpow.pop %v1178
        %v1180 = vmul.f32 %v1160, 1.442695
        %v1181 = vpow.pop %v1180
        %v1182 = vmul.f32 %v1161, 1.442695
        %v1183 = vpow.pop %v1182
        %v1184 = vmul.f32 %v1162, 1.442695
        %v1185 = vpow.pop %v1184
        %v1186 = vmul.f32 %v1163, 1.442695
        %v1187 = vpow.pop %v1186
        %v1188 = vmul.f32 %v1164, 1.442695
        %v1189 = vpow.pop %v1188
        %v1190 = vmul.f32 %v1165, 1.442695
        %v1191 = vpow.pop %v1190
        %v1192 = vmul.f32 %v1166, 1.442695
        %v1193 = vpow.pop %v1192
        %v1194 = vmul.f32 %v1167, 1.442695
        %v1195 = vpow.pop %v1194
        %v1196 = vmul.f32 %v1168, 1.442695
        %v1197 = vpow.pop %v1196
        %v1198 = vmul.f32 %v1169, 1.442695
        %v1199 = vpow.pop %v1198
        %v1200 = vmul.f32 %v1170, 1.442695
        %v1201 = vpow.pop %v1200
        %v1202 = vmul.f32 %v1171, 1.442695
        %v1203 = vpow.pop %v1202
        %v1204 = vsub.f32 %v1173, 1.0
        %v1205 = vsub.f32 %v1175, 1.0
        %v1206 = vsub.f32 %v1177, 1.0
        %v1207 = vsub.f32 %v1179, 1.0
        %v1208 = vsub.f32 %v1181, 1.0
        %v1209 = vsub.f32 %v1183, 1.0
        %v1210 = vsub.f32 %v1185, 1.0
        %v1211 = vsub.f32 %v1187, 1.0
        %v1212 = vsub.f32 %v1189, 1.0
        %v1213 = vsub.f32 %v1191, 1.0
        %v1214 = vsub.f32 %v1193, 1.0
        %v1215 = vsub.f32 %v1195, 1.0
        %v1216 = vsub.f32 %v1197, 1.0
        %v1217 = vsub.f32 %v1199, 1.0
        %v1218 = vsub.f32 %v1201, 1.0
        %v1219 = vsub.f32 %v1203, 1.0
        %v1220 = vsel %vm1140, %v1062, %v1204
        %v1221 = vsel %vm1141, %v1067, %v1205
        %v1222 = vsel %vm1142, %v1072, %v1206
        %v1223 = vsel %vm1143, %v1077, %v1207
        %v1224 = vsel %vm1144, %v1082, %v1208
        %v1225 = vsel %vm1145, %v1087, %v1209
        %v1226 = vsel %vm1146, %v1092, %v1210
        %v1227 = vsel %vm1147, %v1097, %v1211
        %v1228 = vsel %vm1148, %v1102, %v1212
        %v1229 = vsel %vm1149, %v1107, %v1213
        %v1230 = vsel %vm1150, %v1112, %v1214
        %v1231 = vsel %vm1151, %v1117, %v1215
        %v1232 = vsel %vm1152, %v1122, %v1216
        %v1233 = vsel %vm1153, %v1127, %v1217
        %v1234 = vsel %vm1154, %v1132, %v1218
        %v1235 = vsel %vm1155, %v1137, %v1219
        %1236 = vst.msk [vmem:[%s283 + $0x10] sm:$0xff] %vm424, %v1220
        %1237 = vst.msk [vmem:[%s283 + $0x30] sm:$0xff] %vm424, %v1221
        %1238 = vst.msk [vmem:[%s283 + $0x50] sm:$0xff] %vm424, %v1222
        %1239 = vst.msk [vmem:[%s283 + $0x70] sm:$0xff] %vm424, %v1223
        %1240 = vst.msk [vmem:[%s283 + $0x90] sm:$0xff] %vm424, %v1224
        %1241 = vst.msk [vmem:[%s283 + $0xb0] sm:$0xff] %vm424, %v1225
        %1242 = vst.msk [vmem:[%s283 + $0xd0] sm:$0xff] %vm424, %v1226
        %1243 = vst.msk [vmem:[%s283 + $0xf0] sm:$0xff] %vm424, %v1227
        %1244 = vst.msk [vmem:[%s283 + $0x110] sm:$0xff] %vm424, %v1228
        %1245 = vst.msk [vmem:[%s283 + $0x130] sm:$0xff] %vm424, %v1229
        %1246 = vst.msk [vmem:[%s283 + $0x150] sm:$0xff] %vm424, %v1230
        %1247 = vst.msk [vmem:[%s283 + $0x170] sm:$0xff] %vm424, %v1231
        %1248 = vst.msk [vmem:[%s283 + $0x190] sm:$0xff] %vm424, %v1232
        %1249 = vst.msk [vmem:[%s283 + $0x1b0] sm:$0xff] %vm424, %v1233
        %1250 = vst.msk [vmem:[%s283 + $0x1d0] sm:$0xff] %vm424, %v1234
        %1251 = vst.msk [vmem:[%s283 + $0x1f0] sm:$0xff] %vm424, %v1235
        %v1252 = vld [vmem:[%s304 + $0x60] sm:$0xff]
        %v1253 = vld [vmem:[%s304 + $0x68] sm:$0xff]
        %v1254 = vld [vmem:[%s304 + $0x70] sm:$0xff]
        %v1255 = vld [vmem:[%s304 + $0x78] sm:$0xff]
        %1256 = vmatprep.subr.mxu0 0.0
        %1257 = vmatpush1.msra.mxu0 %v1252
        %1258 = vmatprep.subr.mxu0 0.0
        %1259 = vmatpush1.msra.mxu0 %v1253
        %1260 = vmatprep.subr.mxu0 0.0
        %1261 = vmatpush1.msra.mxu0 %v1254
        %1262 = vmatprep.subr.mxu0 0.0
        %1263 = vmatpush1.msra.mxu0 %v1255
        %1264 = vmatprep.subr.mxu0 0.0
        %1265 = vmatpush1.msra.mxu0 0.0
        %1266 = vmatprep.subr.mxu0 0.0
        %1267 = vmatpush1.msra.mxu0 0.0
        %1268 = vmatprep.subr.mxu0 0.0
        %1269 = vmatpush1.msra.mxu0 0.0
        %1270 = vmatprep.subr.mxu0 0.0
        %1271 = vmatpush1.msra.mxu0 0.0
        %1272 = vmatprep.subr.mxu0 0.0
        %1273 = vmatpush1.msra.mxu0 0.0
        %1274 = vmatprep.subr.mxu0 0.0
        %1275 = vmatpush1.msra.mxu0 0.0
        %1276 = vmatprep.subr.mxu0 0.0
        %1277 = vmatpush1.msra.mxu0 0.0
        %1278 = vmatprep.subr.mxu0 0.0
        %1279 = vmatpush1.msra.mxu0 0.0
        %1280 = vmatprep.subr.mxu0 0.0
        %1281 = vmatpush1.msra.mxu0 0.0
        %1282 = vmatprep.subr.mxu0 0.0
        %1283 = vmatpush1.msra.mxu0 0.0
        %1284 = vmatprep.subr.mxu0 0.0
        %1285 = vmatpush1.msra.mxu0 0.0
        %1286 = vmatprep.subr.mxu0 0.0
        %1287 = vmatpush1.msra.mxu0 0.0
        %1288 = vmatprep.subr.mxu0 0.0
        %1289 = vmatpush1.msra.mxu0 0.0
        %1290 = vmatprep.subr.mxu0 0.0
        %1291 = vmatpush1.msra.mxu0 0.0
        %1292 = vmatprep.subr.mxu0 0.0
        %1293 = vmatpush1.msra.mxu0 0.0
        %1294 = vmatprep.subr.mxu0 0.0
        %1295 = vmatpush1.msra.mxu0 0.0
        %1296 = vmatprep.subr.mxu0 0.0
        %1297 = vmatpush1.msra.mxu0 0.0
        %1298 = vmatprep.subr.mxu0 0.0
        %1299 = vmatpush1.msra.mxu0 0.0
        %1300 = vmatprep.subr.mxu0 0.0
        %1301 = vmatpush1.msra.mxu0 0.0
        %1302 = vmatprep.subr.mxu0 0.0
        %1303 = vmatpush1.msra.mxu0 0.0
        %1304 = vmatprep.subr.mxu0 0.0
        %1305 = vmatpush1.msra.mxu0 0.0
        %1306 = vmatprep.subr.mxu0 0.0
        %1307 = vmatpush1.msra.mxu0 0.0
        %1308 = vmatprep.subr.mxu0 0.0
        %1309 = vmatpush1.msra.mxu0 0.0
        %1310 = vmatprep.subr.mxu0 0.0
        %1311 = vmatpush1.msra.mxu0 0.0
        %1312 = vmatprep.subr.mxu0 0.0
        %1313 = vmatpush1.msra.mxu0 0.0
        %1314 = vmatprep.subr.mxu0 0.0
        %1315 = vmatpush1.msra.mxu0 0.0
        %1316 = vmatprep.subr.mxu0 0.0
        %1317 = vmatpush1.msra.mxu0 0.0
        %1318 = vmatprep.subr.mxu0 0.0
        %1319 = vmatpush1.msra.mxu0 0.0
        %1320 = vmatprep.mubr.f32.mxu0 0.0
        %1321 = vmatmul.mubr.f32.gmra.mrb[0].mxu0 %v426
        %v1322 = vpop.f32.mrb[0].mxu0
        %v1323 = vadd.f32 %v347, %v1322
        %v1324 = vpop.f32.mrb[0].mxu0
        %1325 = vmatprep.mubr.f32.mxu0 0.0
        %1326 = vmatmul.mubr.f32.gmra.mrb[0].mxu0 %v429
        %v1327 = vpop.f32.mrb[0].mxu0
        %v1328 = vadd.f32 %v352, %v1327
        %v1329 = vpop.f32.mrb[0].mxu0
        %1330 = vmatprep.mubr.f32.mxu0 0.0
        %1331 = vmatmul.mubr.f32.gmra.mrb[0].mxu0 %v432
        %v1332 = vpop.f32.mrb[0].mxu0
        %v1333 = vadd.f32 %v357, %v1332
        %v1334 = vpop.f32.mrb[0].mxu0
        %1335 = vmatprep.mubr.f32.mxu0 0.0
        %1336 = vmatmul.mubr.f32.gmra.mrb[0].mxu0 %v435
        %v1337 = vpop.f32.mrb[0].mxu0
        %v1338 = vadd.f32 %v362, %v1337
        %v1339 = vpop.f32.mrb[0].mxu0
        %1340 = vmatprep.mubr.f32.mxu0 0.0
        %1341 = vmatmul.mubr.f32.gmra.mrb[0].mxu0 %v438
        %v1342 = vpop.f32.mrb[0].mxu0
        %v1343 = vadd.f32 %v367, %v1342
        %v1344 = vpop.f32.mrb[0].mxu0
        %1345 = vmatprep.mubr.f32.mxu0 0.0
        %1346 = vmatmul.mubr.f32.gmra.mrb[0].mxu0 %v441
        %v1347 = vpop.f32.mrb[0].mxu0
        %v1348 = vadd.f32 %v372, %v1347
        %v1349 = vpop.f32.mrb[0].mxu0
        %1350 = vmatprep.mubr.f32.mxu0 0.0
        %1351 = vmatmul.mubr.f32.gmra.mrb[0].mxu0 %v444
        %v1352 = vpop.f32.mrb[0].mxu0
        %v1353 = vadd.f32 %v377, %v1352
        %v1354 = vpop.f32.mrb[0].mxu0
        %1355 = vmatprep.mubr.f32.mxu0 0.0
        %1356 = vmatmul.mubr.f32.gmra.mrb[0].mxu0 %v447
        %v1357 = vpop.f32.mrb[0].mxu0
        %v1358 = vadd.f32 %v382, %v1357
        %v1359 = vpop.f32.mrb[0].mxu0
        %1360 = vmatprep.mubr.f32.mxu0 0.0
        %1361 = vmatmul.mubr.f32.gmra.mrb[0].mxu0 %v450
        %v1362 = vpop.f32.mrb[0].mxu0
        %v1363 = vadd.f32 %v387, %v1362
        %v1364 = vpop.f32.mrb[0].mxu0
        %1365 = vmatprep.mubr.f32.mxu0 0.0
        %1366 = vmatmul.mubr.f32.gmra.mrb[0].mxu0 %v453
        %v1367 = vpop.f32.mrb[0].mxu0
        %v1368 = vadd.f32 %v392, %v1367
        %v1369 = vpop.f32.mrb[0].mxu0
        %1370 = vmatprep.mubr.f32.mxu0 0.0
        %1371 = vmatmul.mubr.f32.gmra.mrb[0].mxu0 %v456
        %v1372 = vpop.f32.mrb[0].mxu0
        %v1373 = vadd.f32 %v397, %v1372
        %v1374 = vpop.f32.mrb[0].mxu0
        %1375 = vmatprep.mubr.f32.mxu0 0.0
        %1376 = vmatmul.mubr.f32.gmra.mrb[0].mxu0 %v459
        %v1377 = vpop.f32.mrb[0].mxu0
        %v1378 = vadd.f32 %v402, %v1377
        %v1379 = vpop.f32.mrb[0].mxu0
        %1380 = vmatprep.mubr.f32.mxu0 0.0
        %1381 = vmatmul.mubr.f32.gmra.mrb[0].mxu0 %v462
        %v1382 = vpop.f32.mrb[0].mxu0
        %v1383 = vadd.f32 %v407, %v1382
        %v1384 = vpop.f32.mrb[0].mxu0
        %1385 = vmatprep.mubr.f32.mxu0 0.0
        %1386 = vmatmul.mubr.f32.gmra.mrb[0].mxu0 %v465
        %v1387 = vpop.f32.mrb[0].mxu0
        %v1388 = vadd.f32 %v412, %v1387
        %v1389 = vpop.f32.mrb[0].mxu0
        %1390 = vmatprep.mubr.f32.mxu0 0.0
        %1391 = vmatmul.mubr.f32.gmra.mrb[0].mxu0 %v468
        %v1392 = vpop.f32.mrb[0].mxu0
        %v1393 = vadd.f32 %v417, %v1392
        %v1394 = vpop.f32.mrb[0].mxu0
        %1395 = vmatprep.mubr.f32.mxu0 0.0
        %1396 = vmatmul.mubr.f32.gmra.mrb[0].mxu0 %v471
        %v1397 = vpop.f32.mrb[0].mxu0
        %v1398 = vadd.f32 %v422, %v1397
        %v1399 = vpop.f32.mrb[0].mxu0
        %1400 = vdwg.mxu0
        %vm1401 = vcmp.gt.f32.partialorder %v1323, 0.0
        %vm1402 = vcmp.gt.f32.partialorder %v1328, 0.0
        %vm1403 = vcmp.gt.f32.partialorder %v1333, 0.0
        %vm1404 = vcmp.gt.f32.partialorder %v1338, 0.0
        %vm1405 = vcmp.gt.f32.partialorder %v1343, 0.0
        %vm1406 = vcmp.gt.f32.partialorder %v1348, 0.0
        %vm1407 = vcmp.gt.f32.partialorder %v1353, 0.0
        %vm1408 = vcmp.gt.f32.partialorder %v1358, 0.0
        %vm1409 = vcmp.gt.f32.partialorder %v1363, 0.0
        %vm1410 = vcmp.gt.f32.partialorder %v1368, 0.0
        %vm1411 = vcmp.gt.f32.partialorder %v1373, 0.0
        %vm1412 = vcmp.gt.f32.partialorder %v1378, 0.0
        %vm1413 = vcmp.gt.f32.partialorder %v1383, 0.0
        %vm1414 = vcmp.gt.f32.partialorder %v1388, 0.0
        %vm1415 = vcmp.gt.f32.partialorder %v1393, 0.0
        %vm1416 = vcmp.gt.f32.partialorder %v1398, 0.0
        %v1417 = vmin.f32 %v1323, 0.0
        %v1418 = vmin.f32 %v1328, 0.0
        %v1419 = vmin.f32 %v1333, 0.0
        %v1420 = vmin.f32 %v1338, 0.0
        %v1421 = vmin.f32 %v1343, 0.0
        %v1422 = vmin.f32 %v1348, 0.0
        %v1423 = vmin.f32 %v1353, 0.0
        %v1424 = vmin.f32 %v1358, 0.0
        %v1425 = vmin.f32 %v1363, 0.0
        %v1426 = vmin.f32 %v1368, 0.0
        %v1427 = vmin.f32 %v1373, 0.0
        %v1428 = vmin.f32 %v1378, 0.0
        %v1429 = vmin.f32 %v1383, 0.0
        %v1430 = vmin.f32 %v1388, 0.0
        %v1431 = vmin.f32 %v1393, 0.0
        %v1432 = vmin.f32 %v1398, 0.0
        %v1433 = vmul.f32 %v1417, 1.442695
        %v1434 = vpow.pop %v1433
        %v1435 = vmul.f32 %v1418, 1.442695
        %v1436 = vpow.pop %v1435
        %v1437 = vmul.f32 %v1419, 1.442695
        %v1438 = vpow.pop %v1437
        %v1439 = vmul.f32 %v1420, 1.442695
        %v1440 = vpow.pop %v1439
        %v1441 = vmul.f32 %v1421, 1.442695
        %v1442 = vpow.pop %v1441
        %v1443 = vmul.f32 %v1422, 1.442695
        %v1444 = vpow.pop %v1443
        %v1445 = vmul.f32 %v1423, 1.442695
        %v1446 = vpow.pop %v1445
        %v1447 = vmul.f32 %v1424, 1.442695
        %v1448 = vpow.pop %v1447
        %v1449 = vmul.f32 %v1425, 1.442695
        %v1450 = vpow.pop %v1449
        %v1451 = vmul.f32 %v1426, 1.442695
        %v1452 = vpow.pop %v1451
        %v1453 = vmul.f32 %v1427, 1.442695
        %v1454 = vpow.pop %v1453
        %v1455 = vmul.f32 %v1428, 1.442695
        %v1456 = vpow.pop %v1455
        %v1457 = vmul.f32 %v1429, 1.442695
        %v1458 = vpow.pop %v1457
        %v1459 = vmul.f32 %v1430, 1.442695
        %v1460 = vpow.pop %v1459
        %v1461 = vmul.f32 %v1431, 1.442695
        %v1462 = vpow.pop %v1461
        %v1463 = vmul.f32 %v1432, 1.442695
        %v1464 = vpow.pop %v1463
        %v1465 = vsub.f32 %v1434, 1.0
        %v1466 = vsub.f32 %v1436, 1.0
        %v1467 = vsub.f32 %v1438, 1.0
        %v1468 = vsub.f32 %v1440, 1.0
        %v1469 = vsub.f32 %v1442, 1.0
        %v1470 = vsub.f32 %v1444, 1.0
        %v1471 = vsub.f32 %v1446, 1.0
        %v1472 = vsub.f32 %v1448, 1.0
        %v1473 = vsub.f32 %v1450, 1.0
        %v1474 = vsub.f32 %v1452, 1.0
        %v1475 = vsub.f32 %v1454, 1.0
        %v1476 = vsub.f32 %v1456, 1.0
        %v1477 = vsub.f32 %v1458, 1.0
        %v1478 = vsub.f32 %v1460, 1.0
        %v1479 = vsub.f32 %v1462, 1.0
        %v1480 = vsub.f32 %v1464, 1.0
        %v1481 = vsel %vm1401, %v1323, %v1465
        %v1482 = vsel %vm1402, %v1328, %v1466
        %v1483 = vsel %vm1403, %v1333, %v1467
        %v1484 = vsel %vm1404, %v1338, %v1468
        %v1485 = vsel %vm1405, %v1343, %v1469
        %v1486 = vsel %vm1406, %v1348, %v1470
        %v1487 = vsel %vm1407, %v1353, %v1471
        %v1488 = vsel %vm1408, %v1358, %v1472
        %v1489 = vsel %vm1409, %v1363, %v1473
        %v1490 = vsel %vm1410, %v1368, %v1474
        %v1491 = vsel %vm1411, %v1373, %v1475
        %v1492 = vsel %vm1412, %v1378, %v1476
        %v1493 = vsel %vm1413, %v1383, %v1477
        %v1494 = vsel %vm1414, %v1388, %v1478
        %v1495 = vsel %vm1415, %v1393, %v1479
        %v1496 = vsel %vm1416, %v1398, %v1480
        %1497 = vst.msk [vmem:[%s283 + $0x18] sm:$0xff] %vm424, %v1481
        %1498 = vst.msk [vmem:[%s283 + $0x38] sm:$0xff] %vm424, %v1482
        %1499 = vst.msk [vmem:[%s283 + $0x58] sm:$0xff] %vm424, %v1483
        %1500 = vst.msk [vmem:[%s283 + $0x78] sm:$0xff] %vm424, %v1484
        %1501 = vst.msk [vmem:[%s283 + $0x98] sm:$0xff] %vm424, %v1485
        %1502 = vst.msk [vmem:[%s283 + $0xb8] sm:$0xff] %vm424, %v1486
        %1503 = vst.msk [vmem:[%s283 + $0xd8] sm:$0xff] %vm424, %v1487
        %1504 = vst.msk [vmem:[%s283 + $0xf8] sm:$0xff] %vm424, %v1488
        %1505 = vst.msk [vmem:[%s283 + $0x118] sm:$0xff] %vm424, %v1489
        %1506 = vst.msk [vmem:[%s283 + $0x138] sm:$0xff] %vm424, %v1490
        %1507 = vst.msk [vmem:[%s283 + $0x158] sm:$0xff] %vm424, %v1491
        %1508 = vst.msk [vmem:[%s283 + $0x178] sm:$0xff] %vm424, %v1492
        %1509 = vst.msk [vmem:[%s283 + $0x198] sm:$0xff] %vm424, %v1493
        %1510 = vst.msk [vmem:[%s283 + $0x1b8] sm:$0xff] %vm424, %v1494
        %1511 = vst.msk [vmem:[%s283 + $0x1d8] sm:$0xff] %vm424, %v1495
        %1512 = vst.msk [vmem:[%s283 + $0x1f8] sm:$0xff] %vm424, %v1496
        %s1513 = sand.u32 %s172, 1
        %s1514 = scalar_lea.sflag [#allocation3], %s1513
        %s1515 = sand.u32 %s172, 1
        %s1516 = smul.addr %s1515, 512
        %s1517 = scalar_lea.vmem [#allocation2], %s1516
        // Predicated region
        $region41: #{tpu_custom_call.1} parent=39 // pred_check
          %p1518 = pneg %p182
        $region42: #{tpu_custom_call.1} parent=39 // pred_check_branch
          %1520 = sbr.rel (%p1518) target = $region44
        $region43: #{tpu_custom_call.1} parent=39 // pred_region
          %s1521 = smul.u32 16, %s25
          %s1522 = smul.u32 4, %s26
          %s1524 = ssub.s32 8192, 8192
          %1525 = vsyncadd %s1514, %s1524
          %s1526 = smul.addr %s1521, 4
          %s1527 = sadd.s32 %s1522, %s1526
          %s1528 = smul.addr %s24, 64
          %s1529 = sadd.s32 %s1527, %s1528
          %s1530 = smul.addr %s1529, 128
          %s1531 = scalar_lea.hbm %s5, %s1530
          %s1532 = sshll.u32 %s1517, 4
          %s1533 = int_to_ptr.vmem [resolvable:$true] %s1532
          %1538 = dma.vmem_to_hbm [thread:$0]  %s1533, 8192, %s1531, %s1514, 128, 128, 8
        $region44: #{tpu_custom_call.1} parent=39 // pred_fallthru
          _
      $region40: #{tpu_custom_call.1} parent=5 // pred_fallthru
        _
      %p1539 = scmp.le.s32.totalorder 2, %s14
      // Predicated region
      $region45: #{tpu_custom_call.1} parent=5 // pred_check
        %p1540 = pneg %p1539
      $region46: #{tpu_custom_call.1} parent=5 // pred_check_branch
        %1542 = sbr.rel (%p1540) target = $region48
      $region47: #{tpu_custom_call.1} parent=5 // pred_region
        %s1543 = ssub.s32 %s14, 2
        // Predicated region
        $region49: #{tpu_custom_call.1} parent=47 // pred_check
          %p1544 = pneg %p188
        $region50: #{tpu_custom_call.1} parent=47 // pred_check_branch
          %1546 = sbr.rel (%p1544) target = $region52
        $region51: #{tpu_custom_call.1} parent=47 // pred_region
          %s1547 = sand.u32 %s173, 1
          %s1548 = scalar_lea.sflag [#allocation3], %s1547
          %s1549 = sand.u32 %s173, 1
          %s1550 = smul.addr %s1549, 512
          %s1551 = scalar_lea.vmem [#allocation2], %s1550
          %1552 = dma.done %s1548, 8192
        $region52: #{tpu_custom_call.1} parent=47 // pred_fallthru
          _
      $region48: #{tpu_custom_call.1} parent=5 // pred_fallthru
        _
    $region6: #{tpu_custom_call.1} parent=1 // loop_footer
      %s18 = sadd.s32 1, %s14
    $region7: #{tpu_custom_call.1} parent=1 // loop_footer_branch
      %13 = sbr.rel target = $region3
    $region8: #{tpu_custom_call.1} parent=1 // loop_exit
      _
    %1553 = vsyncpa [#allocation3], 1
    %s1554 = scalar_lea.sflag [#allocation3], 1
    %1555 = vsyncpa %s1554, 1

</llo_original>
